<compile_context>
chip_gen: v5e
topology: v5e:2x2
jax: 0.10.0
libtpu: 0.0.40
codegen_flags: <defaults>
</compile_context>

<pallas_src>
import functools

import numpy as np
import jax
import jax.numpy as jnp
from jax import lax
from jax.experimental import pallas as pl
from jax.experimental.pallas import tpu as pltpu

# ---- hyper-parameters (mirrors rnnbptt.__init__, scaled small) --------------
MARKER_DIM = 16      # marker_dim ('real' marker type)
TIME_DIM = 2         # time_dim
HIDDEN_DIM = 32      # GRU hidden size
X_EMBED = 256        # x_embedding_layer[-1]   (hard-coded in the module)
SHARED_OUT = 128     # shared_output_layers[-1] (hard-coded in the module)
SIGMA_MIN = 0.01
GAMMA = 1.0
BPTT = 6             # gradient-only (detach); no effect on forward values

T = 8                # sequence length
BS = 8               # batch size


# ----------------------------- Pallas kernel ---------------------------------
def _rnnbptt_kernel(bs, seq_len,
                    # inputs
                    x_ref, dt_ref, mask_ref,
                    wx_ref, bx_ref,
                    wi_ref, bic_ref,      # fused [Wir|Wiz|Win], [br|bz|bni]
                    whc_ref, bnh_ref,     # fused [Whr|Whz|Whn], bnh
                    we_ref, be_ref,
                    whead_ref, bhead_ref,  # fused [Wmu|Wlv|wh], [bmu|blv|0]
                    sc_ref,               # SMEM (1,2): [time_influence, base_intensity]
                    # outputs
                    time_ll_ref, marker_ll_ref, stats_ref):
    f32 = jnp.float32
    rows, md = x_ref.shape
    hidden = whc_ref.shape[0]

    x = x_ref[...]                                                    # (R, MD)

    # ---- marker embedding (Dropout(0.0) = identity) and hoisted input-side
    # gate projections: one big matmul for all rows/timesteps.
    phi = jnp.maximum(
        jnp.dot(x, wx_ref[...], preferred_element_type=f32) + bx_ref[...], 0.0)
    # (R, 3H) = [r | z | n] input contributions, biases br/bz/bni folded in.
    gates_in = jnp.dot(phi, wi_ref[...], preferred_element_type=f32) + bic_ref[...]

    wh_cat = whc_ref[...]                                             # (H, 3H)
    bnh_b = jnp.broadcast_to(bnh_ref[...], (bs, hidden))              # hoisted broadcast

    # ---- GRUCell recurrence, fully unrolled (seq_len is static).
    # The bptt-boundary detach only affects gradients, not forward values.
    h = jnp.zeros((bs, hidden), f32)
    hs_parts = []
    for seq in range(seq_len):
        hs_parts.append(h)                                            # h[:-1][seq]
        gi = gates_in[seq * bs:(seq + 1) * bs, :]                     # (bs, 3H)
        gh = jnp.dot(h, wh_cat, preferred_element_type=f32)           # one matmul/step
        rz = jax.nn.sigmoid(gi[:, :2 * hidden] + gh[:, :2 * hidden])  # fused r|z sigmoid
        r = rz[:, :hidden]
        z = rz[:, hidden:]
        n = jnp.tanh(gi[:, 2 * hidden:] + r * (gh[:, 2 * hidden:] + bnh_b))
        h = (1.0 - z) * n + z * h

    hs = jnp.concatenate(hs_parts, axis=0)                            # (R, H) == h[:-1]

    # ---- shared hidden embedding + fused output head: [mu | logvar | past]
    he = jnp.maximum(
        jnp.dot(hs, we_ref[...], preferred_element_type=f32) + be_ref[...], 0.0)
    head = jnp.dot(he, whead_ref[...], preferred_element_type=f32) + bhead_ref[...]
    mu = head[:, :md]
    logvar = head[:, md:2 * md]
    past_col = head[:, 2 * md:2 * md + 1]                             # (R, 1)

    # ---- marker head: Gaussian log-likelihood per row
    sigma = jnp.exp(0.5 * logvar) + SIGMA_MIN
    log_prob = (-0.5 * ((x - mu) / sigma) ** 2
                - jnp.log(sigma) - 0.5 * jnp.log(2.0 * jnp.pi))
    marker_ll_col = jnp.sum(log_prob, axis=-1, keepdims=True)         # (R, 1)
    sse_col = jnp.sum((mu - x) ** 2, axis=-1, keepdims=True)          # (R, 1)

    # ---- switch per-row scalars to lane-dense (1, R) layout.
    # Transpose via an eye-mask reduce (no generic relayout needed); the whole
    # time-head elementwise chain then runs 64 lanes wide instead of 1.
    ii = lax.broadcasted_iota(jnp.int32, (rows, rows), 0)
    jj = lax.broadcasted_iota(jnp.int32, (rows, rows), 1)
    eye = (ii == jj).astype(f32)

    def col_to_row(c):                                                # (R,1) -> (1,R)
        return jnp.sum(c * eye, axis=0, keepdims=True)

    marker_ll = col_to_row(marker_ll_col)                             # (1, R)
    past = col_to_row(past_col)                                       # (1, R)
    sse = col_to_row(sse_col)                                         # (1, R)

    dt = dt_ref[...]                                                  # (1, R)
    msk = mask_ref[...]                                               # (1, R)
    ti = sc_ref[0, 0]                                                 # time_influence
    bi = sc_ref[0, 1]                                                 # base_intensity

    # ---- time head: RMTPP intensity log-likelihood
    term1 = past + ti * dt + bi
    log_f_t = term1 + (1.0 / ti) * (jnp.exp(past + bi) - jnp.exp(term1))

    lane = lax.broadcasted_iota(jnp.int32, (1, rows), 1)
    step_mask = (lane >= bs).astype(f32) * msk                        # drops timestep 0

    time_ll_ref[...] = jnp.where(lane >= bs, log_f_t, 0.0)            # zero-padded step 0
    marker_ll_ref[...] = marker_ll

    marker_loss = jnp.sum(-marker_ll * step_mask)
    time_loss = jnp.sum(-log_f_t * step_mask)
    stats_ref[0, 0] = GAMMA * time_loss + marker_loss                 # loss
    stats_ref[0, 1] = marker_loss                                     # marker_nll
    stats_ref[0, 2] = time_loss                                       # time_nll
    stats_ref[0, 3] = jnp.sum(sse * step_mask)                        # marker_mse metric
    # TODO(synk): 'time_mse' needs compute_time_expectation (numerical integration
    # of the RMTPP intensity); not implemented here.


# ----------------------------- wrapper ---------------------------------------
def rnnbptt_forward(x, t, mask, params):
    Tn, Bn, md = x.shape
    Rn = Tn * Bn
    f32 = jnp.float32

    x_flat = x.reshape(Rn, md).astype(f32)
    dt_row = t[:, :, 1].reshape(1, Rn).astype(f32)
    mask_row = mask.reshape(1, Rn).astype(f32)

    # host-side fusion of weights/biases -> fewer, wider kernel operands
    wi_cat = jnp.concatenate([params['Wir'], params['Wiz'], params['Win']], axis=1)
    bi_cat = jnp.concatenate([params['br'], params['bz'], params['bni']], axis=1)
    wh_cat = jnp.concatenate([params['Whr'], params['Whz'], params['Whn']], axis=1)
    w_head = jnp.concatenate([params['Wmu'], params['Wlv'], params['wh']], axis=1)
    b_head = jnp.concatenate([params['bmu'], params['blv'],
                              jnp.zeros((1, 1), f32)], axis=1)
    scalars = jnp.concatenate([params['time_influence'],
                               params['base_intensity']], axis=1)     # (1, 2)

    kernel = functools.partial(_rnnbptt_kernel, Bn, Tn)
    vmem = pl.BlockSpec(memory_space=pltpu.MemorySpace.VMEM)
    smem = pl.BlockSpec(memory_space=pltpu.MemorySpace.SMEM)

    time_row, marker_row, stats = pl.pallas_call(
        kernel,
        out_shape=(
            jax.ShapeDtypeStruct((1, Rn), f32),   # time_log_likelihood (lane-dense)
            jax.ShapeDtypeStruct((1, Rn), f32),   # marker_log_likelihood (lane-dense)
            jax.ShapeDtypeStruct((1, 4), f32),    # [loss, marker_nll, time_nll, marker_mse]
        ),
        in_specs=[vmem] * 13 + [smem],
        out_specs=(vmem, vmem, smem),
    )(x_flat, dt_row, mask_row,
      params['Wx'], params['bx'],
      wi_cat, bi_cat,
      wh_cat, params['bnh'],
      params['We'], params['be'],
      w_head, b_head,
      scalars)

    meta = {
        'marker_nll': stats[0, 1],
        'time_nll': stats[0, 2],
        'true_ll': stats[0, 1] + stats[0, 2],
        'marker_mse': stats[0, 3],
    }
    return (stats[0, 0], meta,
            time_row.reshape(Tn, Bn), marker_row.reshape(Tn, Bn))


# ----------------------------- params -----------------------------------------
def _uniform(key, shape, fan_in):
    bound = 1.0 / np.sqrt(fan_in)
    return jax.random.uniform(key, shape, jnp.float32, -bound, bound)


def init_params(key):
    ks = jax.random.split(key, 20)
    H, XE, SO, MD = HIDDEN_DIM, X_EMBED, SHARED_OUT, MARKER_DIM
    p = {
        'Wx':  _uniform(ks[0], (MD, XE), MD),  'bx':  _uniform(ks[1], (1, XE), MD),
        'Wir': _uniform(ks[2], (XE, H), XE),   'Wiz': _uniform(ks[3], (XE, H), XE),
        'Win': _uniform(ks[4], (XE, H), XE),
        'Whr': _uniform(ks[5], (H, H), H),     'Whz': _uniform(ks[6], (H, H), H),
        'Whn': _uniform(ks[7], (H, H), H),
        'br':  _uniform(ks[8], (1, H), H),     'bz':  _uniform(ks[9], (1, H), H),
        'bni': _uniform(ks[10], (1, H), H),    'bnh': _uniform(ks[11], (1, H), H),
        'We':  _uniform(ks[12], (H, SO), H),   'be':  _uniform(ks[13], (1, SO), H),
        'Wmu': _uniform(ks[14], (SO, MD), SO), 'bmu': _uniform(ks[15], (1, MD), SO),
        'Wlv': _uniform(ks[16], (SO, MD), SO), 'blv': _uniform(ks[17], (1, MD), SO),
        'wh':  _uniform(ks[18], (SO, 1), SO),
        'time_influence': jnp.ones((1, 1), jnp.float32),    # default 1.0
        'base_intensity': jnp.zeros((1, 1), jnp.float32),   # default 0.0
    }
    return p


# ----------------------------- pure-JAX reference ------------------------------
def reference_forward(x, t, mask, p):
    hp = lax.Precision.HIGHEST
    phi = jax.nn.relu(jnp.dot(x, p['Wx'], precision=hp) + p['bx'])

    def step(h, phi_s):
        r = jax.nn.sigmoid(jnp.dot(phi_s, p['Wir'], precision=hp)
                           + jnp.dot(h, p['Whr'], precision=hp) + p['br'])
        z = jax.nn.sigmoid(jnp.dot(phi_s, p['Wiz'], precision=hp)
                           + jnp.dot(h, p['Whz'], precision=hp) + p['bz'])
        n = jnp.tanh(jnp.dot(phi_s, p['Win'], precision=hp) + p['bni']
                     + r * (jnp.dot(h, p['Whn'], precision=hp) + p['bnh']))
        h_new = (1.0 - z) * n + z * h
        return h_new, h                           # emit previous h -> h[:-1]

    h0 = jnp.zeros((x.shape[1], HIDDEN_DIM), jnp.float32)
    _, hs = lax.scan(step, h0, phi)               # (T, BS, H)
    he = jax.nn.relu(jnp.dot(hs, p['We'], precision=hp) + p['be'])
    mu = jnp.dot(he, p['Wmu'], precision=hp) + p['bmu']
    logvar = jnp.dot(he, p['Wlv'], precision=hp) + p['blv']
    sigma = jnp.exp(0.5 * logvar) + SIGMA_MIN
    marker_ll = jnp.sum(-0.5 * ((x - mu) / sigma) ** 2
                        - jnp.log(sigma) - 0.5 * jnp.log(2.0 * jnp.pi), axis=-1)
    past = jnp.dot(he, p['wh'], precision=hp)
    ti = p['time_influence'][0, 0]
    bi = p['base_intensity'][0, 0]
    d = t[:, :, 1:2]
    term1 = past + ti * d + bi
    log_f_t = (term1 + (1.0 / ti) * (jnp.exp(past + bi) - jnp.exp(term1)))[:, :, 0]
    marker_loss = jnp.sum((-marker_ll * mask)[1:])
    time_loss = jnp.sum((-log_f_t * mask)[1:])
    loss = GAMMA * time_loss + marker_loss
    time_ll_pad = jnp.concatenate(
        [jnp.zeros((1, x.shape[1]), jnp.float32), log_f_t[1:]], axis=0)
    return loss, time_ll_pad, marker_ll


# ----------------------------- main -------------------------------------------
if __name__ == "__main__":
    key = jax.random.PRNGKey(0)
    k_param, k_x, k_t = jax.random.split(key, 3)
    params = init_params(k_param)

    x = jax.random.normal(k_x, (T, BS, MARKER_DIM), jnp.float32)
    gaps = jax.random.uniform(k_t, (T, BS), jnp.float32, 0.1, 1.0)
    abs_t = jnp.cumsum(gaps, axis=0)
    t = jnp.stack([abs_t, gaps], axis=-1)            # (T, BS, time_dim)
    mask = jnp.ones((T, BS), jnp.float32)
    mask = mask.at[-2:, : BS // 2].set(0.0)          # some padded timesteps

    result = jax.block_until_ready(rnnbptt_forward(x, t, mask, params))
    loss, meta, time_ll, marker_ll = result

    ref_loss, ref_time_ll, ref_marker_ll = reference_forward(x, t, mask, params)
    np.testing.assert_allclose(np.asarray(loss), np.asarray(ref_loss),
                               rtol=5e-3, atol=5e-3)
    np.testing.assert_allclose(np.asarray(time_ll), np.asarray(ref_time_ll),
                               rtol=5e-3, atol=5e-3)
    np.testing.assert_allclose(np.asarray(marker_ll), np.asarray(ref_marker_ll),
                               rtol=5e-3, atol=5e-3)

    print("KERNEL_OK")
</pallas_src>

<mosaic_0001>
module attributes {stable_mosaic.version = 11 : i64} {
  func.func @_rnnbptt_kernel(%arg0: memref<64x16xf32, #tpu.memory_space<vmem>>, %arg1: memref<1x64xf32, #tpu.memory_space<vmem>>, %arg2: memref<1x64xf32, #tpu.memory_space<vmem>>, %arg3: memref<16x256xf32, #tpu.memory_space<vmem>>, %arg4: memref<1x256xf32, #tpu.memory_space<vmem>>, %arg5: memref<256x96xf32, #tpu.memory_space<vmem>>, %arg6: memref<1x96xf32, #tpu.memory_space<vmem>>, %arg7: memref<32x96xf32, #tpu.memory_space<vmem>>, %arg8: memref<1x32xf32, #tpu.memory_space<vmem>>, %arg9: memref<32x128xf32, #tpu.memory_space<vmem>>, %arg10: memref<1x128xf32, #tpu.memory_space<vmem>>, %arg11: memref<128x33xf32, #tpu.memory_space<vmem>>, %arg12: memref<1x33xf32, #tpu.memory_space<vmem>>, %arg13: memref<1x2xf32, #tpu.memory_space<smem>>, %arg14: memref<1x64xf32, #tpu.memory_space<vmem>>, %arg15: memref<1x64xf32, #tpu.memory_space<vmem>>, %arg16: memref<1x4xf32, #tpu.memory_space<smem>>) attributes {dimension_semantics = [], scalar_prefetch = 0 : i64, scratch_operands = 0 : i64, tpu.core_type = #tpu.core_type<tc>} {
    %c0 = arith.constant 0 : index
    %c0_0 = arith.constant 0 : index
    %0 = vector.load %arg0[%c0, %c0_0] : memref<64x16xf32, #tpu.memory_space<vmem>>, vector<64x16xf32>
    %c0_1 = arith.constant 0 : index
    %c0_2 = arith.constant 0 : index
    %1 = vector.load %arg3[%c0_1, %c0_2] : memref<16x256xf32, #tpu.memory_space<vmem>>, vector<16x256xf32>
    %cst = arith.constant dense<0.000000e+00> : vector<64x256xf32>
    %2 = tpu.matmul %0, %1, %cst {dimension_numbers = #tpu.dot_dimension_numbers<[1], [0], [0], [1], [0, 0, 1, 1], [], []>} : vector<64x16xf32>, vector<16x256xf32>, vector<64x256xf32> -> vector<64x256xf32>
    %c0_3 = arith.constant 0 : index
    %c0_4 = arith.constant 0 : index
    %3 = vector.load %arg4[%c0_3, %c0_4] : memref<1x256xf32, #tpu.memory_space<vmem>>, vector<1x256xf32>
    %4 = vector.broadcast %3 : vector<1x256xf32> to vector<64x256xf32>
    %5 = arith.addf %2, %4 : vector<64x256xf32>
    %cst_5 = arith.constant 0.000000e+00 : f32
    %6 = vector.broadcast %cst_5 : f32 to vector<64x256xf32>
    %7 = arith.maximumf %5, %6 : vector<64x256xf32>
    %c0_6 = arith.constant 0 : index
    %c0_7 = arith.constant 0 : index
    %8 = vector.load %arg5[%c0_6, %c0_7] : memref<256x96xf32, #tpu.memory_space<vmem>>, vector<256x96xf32>
    %cst_8 = arith.constant dense<0.000000e+00> : vector<64x96xf32>
    %9 = tpu.matmul %7, %8, %cst_8 {dimension_numbers = #tpu.dot_dimension_numbers<[1], [0], [0], [1], [0, 0, 1, 1], [], []>} : vector<64x256xf32>, vector<256x96xf32>, vector<64x96xf32> -> vector<64x96xf32>
    %c0_9 = arith.constant 0 : index
    %c0_10 = arith.constant 0 : index
    %10 = vector.load %arg6[%c0_9, %c0_10] : memref<1x96xf32, #tpu.memory_space<vmem>>, vector<1x96xf32>
    %11 = vector.broadcast %10 : vector<1x96xf32> to vector<64x96xf32>
    %12 = arith.addf %9, %11 : vector<64x96xf32>
    %c0_11 = arith.constant 0 : index
    %c0_12 = arith.constant 0 : index
    %13 = vector.load %arg7[%c0_11, %c0_12] : memref<32x96xf32, #tpu.memory_space<vmem>>, vector<32x96xf32>
    %c0_13 = arith.constant 0 : index
    %c0_14 = arith.constant 0 : index
    %14 = vector.load %arg8[%c0_13, %c0_14] : memref<1x32xf32, #tpu.memory_space<vmem>>, vector<1x32xf32>
    %15 = vector.shape_cast %14 : vector<1x32xf32> to vector<1x32xf32>
    %16 = vector.broadcast %15 : vector<1x32xf32> to vector<8x32xf32>
    %cst_15 = arith.constant 0.000000e+00 : f32
    %17 = vector.broadcast %cst_15 : f32 to vector<8x32xf32>
    %18 = vector.extract_strided_slice %12 {offsets = [0, 0], sizes = [8, 96], strides = [1, 1]} : vector<64x96xf32> to vector<8x96xf32>
    %cst_16 = arith.constant dense<0.000000e+00> : vector<8x96xf32>
    %19 = tpu.matmul %17, %13, %cst_16 {dimension_numbers = #tpu.dot_dimension_numbers<[1], [0], [0], [1], [0, 0, 1, 1], [], []>} : vector<8x32xf32>, vector<32x96xf32>, vector<8x96xf32> -> vector<8x96xf32>
    %20 = vector.extract_strided_slice %18 {offsets = [0, 0], sizes = [8, 64], strides = [1, 1]} : vector<8x96xf32> to vector<8x64xf32>
    %21 = vector.extract_strided_slice %19 {offsets = [0, 0], sizes = [8, 64], strides = [1, 1]} : vector<8x96xf32> to vector<8x64xf32>
    %22 = arith.addf %20, %21 : vector<8x64xf32>
    %23 = arith.negf %22 : vector<8x64xf32>
    %24 = math.exp %23 : vector<8x64xf32>
    %cst_17 = arith.constant 1.000000e+00 : f32
    %25 = vector.broadcast %cst_17 : f32 to vector<8x64xf32>
    %26 = arith.addf %25, %24 : vector<8x64xf32>
    %27 = arith.divf %25, %26 : vector<8x64xf32>
    %28 = vector.extract_strided_slice %27 {offsets = [0, 0], sizes = [8, 32], strides = [1, 1]} : vector<8x64xf32> to vector<8x32xf32>
    %29 = vector.extract_strided_slice %27 {offsets = [0, 32], sizes = [8, 32], strides = [1, 1]} : vector<8x64xf32> to vector<8x32xf32>
    %30 = vector.extract_strided_slice %18 {offsets = [0, 64], sizes = [8, 32], strides = [1, 1]} : vector<8x96xf32> to vector<8x32xf32>
    %31 = vector.extract_strided_slice %19 {offsets = [0, 64], sizes = [8, 32], strides = [1, 1]} : vector<8x96xf32> to vector<8x32xf32>
    %32 = arith.addf %31, %16 : vector<8x32xf32>
    %33 = arith.mulf %28, %32 : vector<8x32xf32>
    %34 = arith.addf %30, %33 : vector<8x32xf32>
    %35 = math.tanh %34 : vector<8x32xf32>
    %cst_18 = arith.constant 1.000000e+00 : f32
    %36 = vector.broadcast %cst_18 : f32 to vector<8x32xf32>
    %37 = arith.subf %36, %29 : vector<8x32xf32>
    %38 = arith.mulf %37, %35 : vector<8x32xf32>
    %39 = arith.mulf %29, %17 : vector<8x32xf32>
    %40 = arith.addf %38, %39 : vector<8x32xf32>
    %41 = vector.extract_strided_slice %12 {offsets = [8, 0], sizes = [8, 96], strides = [1, 1]} : vector<64x96xf32> to vector<8x96xf32>
    %cst_19 = arith.constant dense<0.000000e+00> : vector<8x96xf32>
    %42 = tpu.matmul %40, %13, %cst_19 {dimension_numbers = #tpu.dot_dimension_numbers<[1], [0], [0], [1], [0, 0, 1, 1], [], []>} : vector<8x32xf32>, vector<32x96xf32>, vector<8x96xf32> -> vector<8x96xf32>
    %43 = vector.extract_strided_slice %41 {offsets = [0, 0], sizes = [8, 64], strides = [1, 1]} : vector<8x96xf32> to vector<8x64xf32>
    %44 = vector.extract_strided_slice %42 {offsets = [0, 0], sizes = [8, 64], strides = [1, 1]} : vector<8x96xf32> to vector<8x64xf32>
    %45 = arith.addf %43, %44 : vector<8x64xf32>
    %46 = arith.negf %45 : vector<8x64xf32>
    %47 = math.exp %46 : vector<8x64xf32>
    %cst_20 = arith.constant 1.000000e+00 : f32
    %48 = vector.broadcast %cst_20 : f32 to vector<8x64xf32>
    %49 = arith.addf %48, %47 : vector<8x64xf32>
    %50 = arith.divf %48, %49 : vector<8x64xf32>
    %51 = vector.extract_strided_slice %50 {offsets = [0, 0], sizes = [8, 32], strides = [1, 1]} : vector<8x64xf32> to vector<8x32xf32>
    %52 = vector.extract_strided_slice %50 {offsets = [0, 32], sizes = [8, 32], strides = [1, 1]} : vector<8x64xf32> to vector<8x32xf32>
    %53 = vector.extract_strided_slice %41 {offsets = [0, 64], sizes = [8, 32], strides = [1, 1]} : vector<8x96xf32> to vector<8x32xf32>
    %54 = vector.extract_strided_slice %42 {offsets = [0, 64], sizes = [8, 32], strides = [1, 1]} : vector<8x96xf32> to vector<8x32xf32>
    %55 = arith.addf %54, %16 : vector<8x32xf32>
    %56 = arith.mulf %51, %55 : vector<8x32xf32>
    %57 = arith.addf %53, %56 : vector<8x32xf32>
    %58 = math.tanh %57 : vector<8x32xf32>
    %cst_21 = arith.constant 1.000000e+00 : f32
    %59 = vector.broadcast %cst_21 : f32 to vector<8x32xf32>
    %60 = arith.subf %59, %52 : vector<8x32xf32>
    %61 = arith.mulf %60, %58 : vector<8x32xf32>
    %62 = arith.mulf %52, %40 : vector<8x32xf32>
    %63 = arith.addf %61, %62 : vector<8x32xf32>
    %64 = vector.extract_strided_slice %12 {offsets = [16, 0], sizes = [8, 96], strides = [1, 1]} : vector<64x96xf32> to vector<8x96xf32>
    %cst_22 = arith.constant dense<0.000000e+00> : vector<8x96xf32>
    %65 = tpu.matmul %63, %13, %cst_22 {dimension_numbers = #tpu.dot_dimension_numbers<[1], [0], [0], [1], [0, 0, 1, 1], [], []>} : vector<8x32xf32>, vector<32x96xf32>, vector<8x96xf32> -> vector<8x96xf32>
    %66 = vector.extract_strided_slice %64 {offsets = [0, 0], sizes = [8, 64], strides = [1, 1]} : vector<8x96xf32> to vector<8x64xf32>
    %67 = vector.extract_strided_slice %65 {offsets = [0, 0], sizes = [8, 64], strides = [1, 1]} : vector<8x96xf32> to vector<8x64xf32>
    %68 = arith.addf %66, %67 : vector<8x64xf32>
    %69 = arith.negf %68 : vector<8x64xf32>
    %70 = math.exp %69 : vector<8x64xf32>
    %cst_23 = arith.constant 1.000000e+00 : f32
    %71 = vector.broadcast %cst_23 : f32 to vector<8x64xf32>
    %72 = arith.addf %71, %70 : vector<8x64xf32>
    %73 = arith.divf %71, %72 : vector<8x64xf32>
    %74 = vector.extract_strided_slice %73 {offsets = [0, 0], sizes = [8, 32], strides = [1, 1]} : vector<8x64xf32> to vector<8x32xf32>
    %75 = vector.extract_strided_slice %73 {offsets = [0, 32], sizes = [8, 32], strides = [1, 1]} : vector<8x64xf32> to vector<8x32xf32>
    %76 = vector.extract_strided_slice %64 {offsets = [0, 64], sizes = [8, 32], strides = [1, 1]} : vector<8x96xf32> to vector<8x32xf32>
    %77 = vector.extract_strided_slice %65 {offsets = [0, 64], sizes = [8, 32], strides = [1, 1]} : vector<8x96xf32> to vector<8x32xf32>
    %78 = arith.addf %77, %16 : vector<8x32xf32>
    %79 = arith.mulf %74, %78 : vector<8x32xf32>
    %80 = arith.addf %76, %79 : vector<8x32xf32>
    %81 = math.tanh %80 : vector<8x32xf32>
    %cst_24 = arith.constant 1.000000e+00 : f32
    %82 = vector.broadcast %cst_24 : f32 to vector<8x32xf32>
    %83 = arith.subf %82, %75 : vector<8x32xf32>
    %84 = arith.mulf %83, %81 : vector<8x32xf32>
    %85 = arith.mulf %75, %63 : vector<8x32xf32>
    %86 = arith.addf %84, %85 : vector<8x32xf32>
    %87 = vector.extract_strided_slice %12 {offsets = [24, 0], sizes = [8, 96], strides = [1, 1]} : vector<64x96xf32> to vector<8x96xf32>
    %cst_25 = arith.constant dense<0.000000e+00> : vector<8x96xf32>
    %88 = tpu.matmul %86, %13, %cst_25 {dimension_numbers = #tpu.dot_dimension_numbers<[1], [0], [0], [1], [0, 0, 1, 1], [], []>} : vector<8x32xf32>, vector<32x96xf32>, vector<8x96xf32> -> vector<8x96xf32>
    %89 = vector.extract_strided_slice %87 {offsets = [0, 0], sizes = [8, 64], strides = [1, 1]} : vector<8x96xf32> to vector<8x64xf32>
    %90 = vector.extract_strided_slice %88 {offsets = [0, 0], sizes = [8, 64], strides = [1, 1]} : vector<8x96xf32> to vector<8x64xf32>
    %91 = arith.addf %89, %90 : vector<8x64xf32>
    %92 = arith.negf %91 : vector<8x64xf32>
    %93 = math.exp %92 : vector<8x64xf32>
    %cst_26 = arith.constant 1.000000e+00 : f32
    %94 = vector.broadcast %cst_26 : f32 to vector<8x64xf32>
    %95 = arith.addf %94, %93 : vector<8x64xf32>
    %96 = arith.divf %94, %95 : vector<8x64xf32>
    %97 = vector.extract_strided_slice %96 {offsets = [0, 0], sizes = [8, 32], strides = [1, 1]} : vector<8x64xf32> to vector<8x32xf32>
    %98 = vector.extract_strided_slice %96 {offsets = [0, 32], sizes = [8, 32], strides = [1, 1]} : vector<8x64xf32> to vector<8x32xf32>
    %99 = vector.extract_strided_slice %87 {offsets = [0, 64], sizes = [8, 32], strides = [1, 1]} : vector<8x96xf32> to vector<8x32xf32>
    %100 = vector.extract_strided_slice %88 {offsets = [0, 64], sizes = [8, 32], strides = [1, 1]} : vector<8x96xf32> to vector<8x32xf32>
    %101 = arith.addf %100, %16 : vector<8x32xf32>
    %102 = arith.mulf %97, %101 : vector<8x32xf32>
    %103 = arith.addf %99, %102 : vector<8x32xf32>
    %104 = math.tanh %103 : vector<8x32xf32>
    %cst_27 = arith.constant 1.000000e+00 : f32
    %105 = vector.broadcast %cst_27 : f32 to vector<8x32xf32>
    %106 = arith.subf %105, %98 : vector<8x32xf32>
    %107 = arith.mulf %106, %104 : vector<8x32xf32>
    %108 = arith.mulf %98, %86 : vector<8x32xf32>
    %109 = arith.addf %107, %108 : vector<8x32xf32>
    %110 = vector.extract_strided_slice %12 {offsets = [32, 0], sizes = [8, 96], strides = [1, 1]} : vector<64x96xf32> to vector<8x96xf32>
    %cst_28 = arith.constant dense<0.000000e+00> : vector<8x96xf32>
    %111 = tpu.matmul %109, %13, %cst_28 {dimension_numbers = #tpu.dot_dimension_numbers<[1], [0], [0], [1], [0, 0, 1, 1], [], []>} : vector<8x32xf32>, vector<32x96xf32>, vector<8x96xf32> -> vector<8x96xf32>
    %112 = vector.extract_strided_slice %110 {offsets = [0, 0], sizes = [8, 64], strides = [1, 1]} : vector<8x96xf32> to vector<8x64xf32>
    %113 = vector.extract_strided_slice %111 {offsets = [0, 0], sizes = [8, 64], strides = [1, 1]} : vector<8x96xf32> to vector<8x64xf32>
    %114 = arith.addf %112, %113 : vector<8x64xf32>
    %115 = arith.negf %114 : vector<8x64xf32>
    %116 = math.exp %115 : vector<8x64xf32>
    %cst_29 = arith.constant 1.000000e+00 : f32
    %117 = vector.broadcast %cst_29 : f32 to vector<8x64xf32>
    %118 = arith.addf %117, %116 : vector<8x64xf32>
    %119 = arith.divf %117, %118 : vector<8x64xf32>
    %120 = vector.extract_strided_slice %119 {offsets = [0, 0], sizes = [8, 32], strides = [1, 1]} : vector<8x64xf32> to vector<8x32xf32>
    %121 = vector.extract_strided_slice %119 {offsets = [0, 32], sizes = [8, 32], strides = [1, 1]} : vector<8x64xf32> to vector<8x32xf32>
    %122 = vector.extract_strided_slice %110 {offsets = [0, 64], sizes = [8, 32], strides = [1, 1]} : vector<8x96xf32> to vector<8x32xf32>
    %123 = vector.extract_strided_slice %111 {offsets = [0, 64], sizes = [8, 32], strides = [1, 1]} : vector<8x96xf32> to vector<8x32xf32>
    %124 = arith.addf %123, %16 : vector<8x32xf32>
    %125 = arith.mulf %120, %124 : vector<8x32xf32>
    %126 = arith.addf %122, %125 : vector<8x32xf32>
    %127 = math.tanh %126 : vector<8x32xf32>
    %cst_30 = arith.constant 1.000000e+00 : f32
    %128 = vector.broadcast %cst_30 : f32 to vector<8x32xf32>
    %129 = arith.subf %128, %121 : vector<8x32xf32>
    %130 = arith.mulf %129, %127 : vector<8x32xf32>
    %131 = arith.mulf %121, %109 : vector<8x32xf32>
    %132 = arith.addf %130, %131 : vector<8x32xf32>
    %133 = vector.extract_strided_slice %12 {offsets = [40, 0], sizes = [8, 96], strides = [1, 1]} : vector<64x96xf32> to vector<8x96xf32>
    %cst_31 = arith.constant dense<0.000000e+00> : vector<8x96xf32>
    %134 = tpu.matmul %132, %13, %cst_31 {dimension_numbers = #tpu.dot_dimension_numbers<[1], [0], [0], [1], [0, 0, 1, 1], [], []>} : vector<8x32xf32>, vector<32x96xf32>, vector<8x96xf32> -> vector<8x96xf32>
    %135 = vector.extract_strided_slice %133 {offsets = [0, 0], sizes = [8, 64], strides = [1, 1]} : vector<8x96xf32> to vector<8x64xf32>
    %136 = vector.extract_strided_slice %134 {offsets = [0, 0], sizes = [8, 64], strides = [1, 1]} : vector<8x96xf32> to vector<8x64xf32>
    %137 = arith.addf %135, %136 : vector<8x64xf32>
    %138 = arith.negf %137 : vector<8x64xf32>
    %139 = math.exp %138 : vector<8x64xf32>
    %cst_32 = arith.constant 1.000000e+00 : f32
    %140 = vector.broadcast %cst_32 : f32 to vector<8x64xf32>
    %141 = arith.addf %140, %139 : vector<8x64xf32>
    %142 = arith.divf %140, %141 : vector<8x64xf32>
    %143 = vector.extract_strided_slice %142 {offsets = [0, 0], sizes = [8, 32], strides = [1, 1]} : vector<8x64xf32> to vector<8x32xf32>
    %144 = vector.extract_strided_slice %142 {offsets = [0, 32], sizes = [8, 32], strides = [1, 1]} : vector<8x64xf32> to vector<8x32xf32>
    %145 = vector.extract_strided_slice %133 {offsets = [0, 64], sizes = [8, 32], strides = [1, 1]} : vector<8x96xf32> to vector<8x32xf32>
    %146 = vector.extract_strided_slice %134 {offsets = [0, 64], sizes = [8, 32], strides = [1, 1]} : vector<8x96xf32> to vector<8x32xf32>
    %147 = arith.addf %146, %16 : vector<8x32xf32>
    %148 = arith.mulf %143, %147 : vector<8x32xf32>
    %149 = arith.addf %145, %148 : vector<8x32xf32>
    %150 = math.tanh %149 : vector<8x32xf32>
    %cst_33 = arith.constant 1.000000e+00 : f32
    %151 = vector.broadcast %cst_33 : f32 to vector<8x32xf32>
    %152 = arith.subf %151, %144 : vector<8x32xf32>
    %153 = arith.mulf %152, %150 : vector<8x32xf32>
    %154 = arith.mulf %144, %132 : vector<8x32xf32>
    %155 = arith.addf %153, %154 : vector<8x32xf32>
    %156 = vector.extract_strided_slice %12 {offsets = [48, 0], sizes = [8, 96], strides = [1, 1]} : vector<64x96xf32> to vector<8x96xf32>
    %cst_34 = arith.constant dense<0.000000e+00> : vector<8x96xf32>
    %157 = tpu.matmul %155, %13, %cst_34 {dimension_numbers = #tpu.dot_dimension_numbers<[1], [0], [0], [1], [0, 0, 1, 1], [], []>} : vector<8x32xf32>, vector<32x96xf32>, vector<8x96xf32> -> vector<8x96xf32>
    %158 = vector.extract_strided_slice %156 {offsets = [0, 0], sizes = [8, 64], strides = [1, 1]} : vector<8x96xf32> to vector<8x64xf32>
    %159 = vector.extract_strided_slice %157 {offsets = [0, 0], sizes = [8, 64], strides = [1, 1]} : vector<8x96xf32> to vector<8x64xf32>
    %160 = arith.addf %158, %159 : vector<8x64xf32>
    %161 = arith.negf %160 : vector<8x64xf32>
    %162 = math.exp %161 : vector<8x64xf32>
    %cst_35 = arith.constant 1.000000e+00 : f32
    %163 = vector.broadcast %cst_35 : f32 to vector<8x64xf32>
    %164 = arith.addf %163, %162 : vector<8x64xf32>
    %165 = arith.divf %163, %164 : vector<8x64xf32>
    %166 = vector.extract_strided_slice %165 {offsets = [0, 0], sizes = [8, 32], strides = [1, 1]} : vector<8x64xf32> to vector<8x32xf32>
    %167 = vector.extract_strided_slice %165 {offsets = [0, 32], sizes = [8, 32], strides = [1, 1]} : vector<8x64xf32> to vector<8x32xf32>
    %168 = vector.extract_strided_slice %156 {offsets = [0, 64], sizes = [8, 32], strides = [1, 1]} : vector<8x96xf32> to vector<8x32xf32>
    %169 = vector.extract_strided_slice %157 {offsets = [0, 64], sizes = [8, 32], strides = [1, 1]} : vector<8x96xf32> to vector<8x32xf32>
    %170 = arith.addf %169, %16 : vector<8x32xf32>
    %171 = arith.mulf %166, %170 : vector<8x32xf32>
    %172 = arith.addf %168, %171 : vector<8x32xf32>
    %173 = math.tanh %172 : vector<8x32xf32>
    %cst_36 = arith.constant 1.000000e+00 : f32
    %174 = vector.broadcast %cst_36 : f32 to vector<8x32xf32>
    %175 = arith.subf %174, %167 : vector<8x32xf32>
    %176 = arith.mulf %175, %173 : vector<8x32xf32>
    %177 = arith.mulf %167, %155 : vector<8x32xf32>
    %178 = arith.addf %176, %177 : vector<8x32xf32>
    %179 = tpu.concatenate %17, %40, %63, %86, %109, %132, %155, %178 in 0 : vector<8x32xf32>, vector<8x32xf32>, vector<8x32xf32>, vector<8x32xf32>, vector<8x32xf32>, vector<8x32xf32>, vector<8x32xf32>, vector<8x32xf32> -> vector<64x32xf32>
    %c0_37 = arith.constant 0 : index
    %c0_38 = arith.constant 0 : index
    %180 = vector.load %arg9[%c0_37, %c0_38] : memref<32x128xf32, #tpu.memory_space<vmem>>, vector<32x128xf32>
    %cst_39 = arith.constant dense<0.000000e+00> : vector<64x128xf32>
    %181 = tpu.matmul %179, %180, %cst_39 {dimension_numbers = #tpu.dot_dimension_numbers<[1], [0], [0], [1], [0, 0, 1, 1], [], []>} : vector<64x32xf32>, vector<32x128xf32>, vector<64x128xf32> -> vector<64x128xf32>
    %c0_40 = arith.constant 0 : index
    %c0_41 = arith.constant 0 : index
    %182 = vector.load %arg10[%c0_40, %c0_41] : memref<1x128xf32, #tpu.memory_space<vmem>>, vector<1x128xf32>
    %183 = vector.broadcast %182 : vector<1x128xf32> to vector<64x128xf32>
    %184 = arith.addf %181, %183 : vector<64x128xf32>
    %cst_42 = arith.constant 0.000000e+00 : f32
    %185 = vector.broadcast %cst_42 : f32 to vector<64x128xf32>
    %186 = arith.maximumf %184, %185 : vector<64x128xf32>
    %c0_43 = arith.constant 0 : index
    %c0_44 = arith.constant 0 : index
    %187 = vector.load %arg11[%c0_43, %c0_44] : memref<128x33xf32, #tpu.memory_space<vmem>>, vector<128x33xf32>
    %cst_45 = arith.constant dense<0.000000e+00> : vector<64x33xf32>
    %188 = tpu.matmul %186, %187, %cst_45 {dimension_numbers = #tpu.dot_dimension_numbers<[1], [0], [0], [1], [0, 0, 1, 1], [], []>} : vector<64x128xf32>, vector<128x33xf32>, vector<64x33xf32> -> vector<64x33xf32>
    %c0_46 = arith.constant 0 : index
    %c0_47 = arith.constant 0 : index
    %189 = vector.load %arg12[%c0_46, %c0_47] : memref<1x33xf32, #tpu.memory_space<vmem>>, vector<1x33xf32>
    %190 = vector.broadcast %189 : vector<1x33xf32> to vector<64x33xf32>
    %191 = arith.addf %188, %190 : vector<64x33xf32>
    %192 = vector.extract_strided_slice %191 {offsets = [0, 0], sizes = [64, 16], strides = [1, 1]} : vector<64x33xf32> to vector<64x16xf32>
    %193 = vector.extract_strided_slice %191 {offsets = [0, 16], sizes = [64, 16], strides = [1, 1]} : vector<64x33xf32> to vector<64x16xf32>
    %194 = vector.extract_strided_slice %191 {offsets = [0, 32], sizes = [64, 1], strides = [1, 1]} : vector<64x33xf32> to vector<64x1xf32>
    %cst_48 = arith.constant 5.000000e-01 : f32
    %195 = vector.broadcast %cst_48 : f32 to vector<64x16xf32>
    %196 = arith.mulf %195, %193 : vector<64x16xf32>
    %197 = math.exp %196 : vector<64x16xf32>
    %cst_49 = arith.constant 0.00999999977 : f32
    %198 = vector.broadcast %cst_49 : f32 to vector<64x16xf32>
    %199 = arith.addf %197, %198 : vector<64x16xf32>
    %200 = arith.subf %0, %192 : vector<64x16xf32>
    %201 = arith.divf %200, %199 : vector<64x16xf32>
    %202 = arith.mulf %201, %201 : vector<64x16xf32>
    %cst_50 = arith.constant -5.000000e-01 : f32
    %203 = vector.broadcast %cst_50 : f32 to vector<64x16xf32>
    %204 = arith.mulf %203, %202 : vector<64x16xf32>
    %205 = math.log %199 : vector<64x16xf32>
    %206 = arith.subf %204, %205 : vector<64x16xf32>
    %cst_51 = arith.constant 6.28318548 : f32
    %207 = math.log %cst_51 : f32
    %cst_52 = arith.constant 5.000000e-01 : f32
    %208 = arith.mulf %cst_52, %207 : f32
    %209 = vector.broadcast %208 : f32 to vector<64x16xf32>
    %210 = arith.subf %206, %209 : vector<64x16xf32>
    %cst_53 = arith.constant dense<0.000000e+00> : vector<64xf32>
    %211 = vector.multi_reduction <add>, %210, %cst_53 [1] : vector<64x16xf32> to vector<64xf32>
    %212 = vector.shape_cast %211 : vector<64xf32> to vector<64x1xf32>
    %213 = arith.subf %192, %0 : vector<64x16xf32>
    %214 = arith.mulf %213, %213 : vector<64x16xf32>
    %cst_54 = arith.constant dense<0.000000e+00> : vector<64xf32>
    %215 = vector.multi_reduction <add>, %214, %cst_54 [1] : vector<64x16xf32> to vector<64xf32>
    %216 = vector.shape_cast %215 : vector<64xf32> to vector<64x1xf32>
    %217 = tpu.iota {dimensions = array<i32: 0>} : vector<64x64xi32>
    %218 = tpu.iota {dimensions = array<i32: 1>} : vector<64x64xi32>
    %219 = arith.cmpi eq, %217, %218 : vector<64x64xi32>
    %220 = arith.extui %219 : vector<64x64xi1> to vector<64x64xi32>
    %221 = arith.sitofp %220 : vector<64x64xi32> to vector<64x64xf32>
    %222 = vector.broadcast %212 : vector<64x1xf32> to vector<64x64xf32>
    %223 = arith.mulf %222, %221 : vector<64x64xf32>
    %cst_55 = arith.constant dense<0.000000e+00> : vector<64xf32>
    %224 = vector.multi_reduction <add>, %223, %cst_55 [0] : vector<64x64xf32> to vector<64xf32>
    %225 = vector.shape_cast %224 : vector<64xf32> to vector<1x64xf32>
    %226 = vector.broadcast %194 : vector<64x1xf32> to vector<64x64xf32>
    %227 = arith.mulf %226, %221 : vector<64x64xf32>
    %cst_56 = arith.constant dense<0.000000e+00> : vector<64xf32>
    %228 = vector.multi_reduction <add>, %227, %cst_56 [0] : vector<64x64xf32> to vector<64xf32>
    %229 = vector.shape_cast %228 : vector<64xf32> to vector<1x64xf32>
    %230 = vector.broadcast %216 : vector<64x1xf32> to vector<64x64xf32>
    %231 = arith.mulf %230, %221 : vector<64x64xf32>
    %cst_57 = arith.constant dense<0.000000e+00> : vector<64xf32>
    %232 = vector.multi_reduction <add>, %231, %cst_57 [0] : vector<64x64xf32> to vector<64xf32>
    %233 = vector.shape_cast %232 : vector<64xf32> to vector<1x64xf32>
    %c0_58 = arith.constant 0 : index
    %c0_59 = arith.constant 0 : index
    %234 = vector.load %arg1[%c0_58, %c0_59] : memref<1x64xf32, #tpu.memory_space<vmem>>, vector<1x64xf32>
    %c0_60 = arith.constant 0 : index
    %c0_61 = arith.constant 0 : index
    %235 = vector.load %arg2[%c0_60, %c0_61] : memref<1x64xf32, #tpu.memory_space<vmem>>, vector<1x64xf32>
    %c0_62 = arith.constant 0 : index
    %c0_63 = arith.constant 0 : index
    %236 = memref.load %arg13[%c0_62, %c0_63] : memref<1x2xf32, #tpu.memory_space<smem>>
    %c0_64 = arith.constant 0 : index
    %c1 = arith.constant 1 : index
    %237 = memref.load %arg13[%c0_64, %c1] : memref<1x2xf32, #tpu.memory_space<smem>>
    %238 = vector.broadcast %236 : f32 to vector<1x64xf32>
    %239 = arith.mulf %238, %234 : vector<1x64xf32>
    %240 = arith.addf %229, %239 : vector<1x64xf32>
    %241 = vector.broadcast %237 : f32 to vector<1x64xf32>
    %242 = arith.addf %240, %241 : vector<1x64xf32>
    %cst_65 = arith.constant 1.000000e+00 : f32
    %243 = arith.divf %cst_65, %236 : f32
    %244 = vector.broadcast %237 : f32 to vector<1x64xf32>
    %245 = arith.addf %229, %244 : vector<1x64xf32>
    %246 = math.exp %245 : vector<1x64xf32>
    %247 = math.exp %242 : vector<1x64xf32>
    %248 = arith.subf %246, %247 : vector<1x64xf32>
    %249 = vector.broadcast %243 : f32 to vector<1x64xf32>
    %250 = arith.mulf %249, %248 : vector<1x64xf32>
    %251 = arith.addf %242, %250 : vector<1x64xf32>
    %252 = tpu.iota {dimensions = array<i32: 1>} : vector<1x64xi32>
    %c8_i32 = arith.constant 8 : i32
    %253 = vector.broadcast %c8_i32 : i32 to vector<1x64xi32>
    %254 = arith.cmpi sge, %252, %253 : vector<1x64xi32>
    %255 = arith.extui %254 : vector<1x64xi1> to vector<1x64xi32>
    %256 = arith.sitofp %255 : vector<1x64xi32> to vector<1x64xf32>
    %257 = arith.mulf %256, %235 : vector<1x64xf32>
    %c8_i32_66 = arith.constant 8 : i32
    %258 = vector.broadcast %c8_i32_66 : i32 to vector<1x64xi32>
    %259 = arith.cmpi sge, %252, %258 : vector<1x64xi32>
    %cst_67 = arith.constant 0.000000e+00 : f32
    %260 = vector.broadcast %cst_67 : f32 to vector<1x64xf32>
    %261 = arith.select %259, %251, %260 : vector<1x64xi1>, vector<1x64xf32>
    %c0_68 = arith.constant 0 : index
    %c0_69 = arith.constant 0 : index
    %262 = vector.load %arg14[%c0_68, %c0_69] : memref<1x64xf32, #tpu.memory_space<vmem>>, vector<1x64xf32>
    tpu.vector_store %arg14[%c0_68, %c0_69], %261 {strides = array<i32>} : memref<1x64xf32, #tpu.memory_space<vmem>>, vector<1x64xf32>,
    %c0_70 = arith.constant 0 : index
    %c0_71 = arith.constant 0 : index
    %263 = vector.load %arg15[%c0_70, %c0_71] : memref<1x64xf32, #tpu.memory_space<vmem>>, vector<1x64xf32>
    tpu.vector_store %arg15[%c0_70, %c0_71], %225 {strides = array<i32>} : memref<1x64xf32, #tpu.memory_space<vmem>>, vector<1x64xf32>,
    %cst_72 = arith.constant 0.000000e+00 : f32
    %264 = vector.broadcast %cst_72 : f32 to vector<1x64xf32>
    %265 = arith.subf %264, %225 : vector<1x64xf32>
    %266 = arith.mulf %265, %257 : vector<1x64xf32>
    %267 = vector.shape_cast %266 : vector<1x64xf32> to vector<1x1x64xf32>
    %cst_73 = arith.constant dense<0.000000e+00> : vector<1xf32>
    %268 = vector.multi_reduction <add>, %267, %cst_73 [1, 2] : vector<1x1x64xf32> to vector<1xf32>
    %269 = vector.shape_cast %268 : vector<1xf32> to vector<1x1x1xf32>
    %270 = vector.extract %269[0, 0, 0] : f32 from vector<1x1x1xf32>
    %cst_74 = arith.constant 0.000000e+00 : f32
    %271 = vector.broadcast %cst_74 : f32 to vector<1x64xf32>
    %272 = arith.subf %271, %251 : vector<1x64xf32>
    %273 = arith.mulf %272, %257 : vector<1x64xf32>
    %274 = vector.shape_cast %273 : vector<1x64xf32> to vector<1x1x64xf32>
    %cst_75 = arith.constant dense<0.000000e+00> : vector<1xf32>
    %275 = vector.multi_reduction <add>, %274, %cst_75 [1, 2] : vector<1x1x64xf32> to vector<1xf32>
    %276 = vector.shape_cast %275 : vector<1xf32> to vector<1x1x1xf32>
    %277 = vector.extract %276[0, 0, 0] : f32 from vector<1x1x1xf32>
    %cst_76 = arith.constant 1.000000e+00 : f32
    %278 = arith.mulf %cst_76, %277 : f32
    %279 = arith.addf %278, %270 : f32
    %c0_77 = arith.constant 0 : index
    %c0_78 = arith.constant 0 : index
    %280 = memref.load %arg16[%c0_77, %c0_78] : memref<1x4xf32, #tpu.memory_space<smem>>
    memref.store %279, %arg16[%c0_77, %c0_78] : memref<1x4xf32, #tpu.memory_space<smem>>
    %c0_79 = arith.constant 0 : index
    %c1_80 = arith.constant 1 : index
    %281 = memref.load %arg16[%c0_79, %c1_80] : memref<1x4xf32, #tpu.memory_space<smem>>
    memref.store %270, %arg16[%c0_79, %c1_80] : memref<1x4xf32, #tpu.memory_space<smem>>
    %c0_81 = arith.constant 0 : index
    %c2 = arith.constant 2 : index
    %282 = memref.load %arg16[%c0_81, %c2] : memref<1x4xf32, #tpu.memory_space<smem>>
    memref.store %277, %arg16[%c0_81, %c2] : memref<1x4xf32, #tpu.memory_space<smem>>
    %283 = arith.mulf %233, %257 : vector<1x64xf32>
    %284 = vector.shape_cast %283 : vector<1x64xf32> to vector<1x1x64xf32>
    %cst_82 = arith.constant dense<0.000000e+00> : vector<1xf32>
    %285 = vector.multi_reduction <add>, %284, %cst_82 [1, 2] : vector<1x1x64xf32> to vector<1xf32>
    %286 = vector.shape_cast %285 : vector<1xf32> to vector<1x1x1xf32>
    %287 = vector.extract %286[0, 0, 0] : f32 from vector<1x1x1xf32>
    %c0_83 = arith.constant 0 : index
    %c3 = arith.constant 3 : index
    %288 = memref.load %arg16[%c0_83, %c3] : memref<1x4xf32, #tpu.memory_space<smem>>
    memref.store %287, %arg16[%c0_83, %c3] : memref<1x4xf32, #tpu.memory_space<smem>>
    return
  }
}

</mosaic_0001>

<llo_original>
// kernel: tpu_custom_call.1
$region0: #{tpu_custom_call.1}
  #allocation0 [shape = 'u32[]', space=smem, size = 0x4, offset = 0x4, fixed_abs, tag = 'smem constant byte address 0x4 - core index']
  #allocation1 [shape = 'u32[72,128]{1,0:T(1,128)}', space=vmem, size = 0x9000, scoped, tag = 'internal scratch']
  %s0 = inlined_call_operand.vmem [shape: f32[64,16], index: 0, kind: input, shape index: {}]
  %s1 = inlined_call_operand.vmem [shape: f32[1,64], index: 1, kind: input, shape index: {}]
  %s2 = inlined_call_operand.vmem [shape: f32[1,64], index: 2, kind: input, shape index: {}]
  %s3 = inlined_call_operand.vmem [shape: f32[16,256], index: 3, kind: input, shape index: {}]
  %s4 = inlined_call_operand.vmem [shape: f32[1,256], index: 4, kind: input, shape index: {}]
  %s5 = inlined_call_operand.vmem [shape: f32[256,96], index: 5, kind: input, shape index: {}]
  %s6 = inlined_call_operand.vmem [shape: f32[1,96], index: 6, kind: input, shape index: {}]
  %s7 = inlined_call_operand.vmem [shape: f32[32,96], index: 7, kind: input, shape index: {}]
  %s8 = inlined_call_operand.vmem [shape: f32[1,32], index: 8, kind: input, shape index: {}]
  %s9 = inlined_call_operand.vmem [shape: f32[32,128], index: 9, kind: input, shape index: {}]
  %s10 = inlined_call_operand.vmem [shape: f32[1,128], index: 10, kind: input, shape index: {}]
  %s11 = inlined_call_operand.vmem [shape: f32[128,33], index: 11, kind: input, shape index: {}]
  %s12 = inlined_call_operand.vmem [shape: f32[1,33], index: 12, kind: input, shape index: {}]
  %s13 = inlined_call_operand.vmem [shape: f32[1,2], index: 13, kind: input, shape index: {}]
  %s14 = inlined_call_operand.hbm [shape: f32[1,64], index: 14, kind: output, shape index: {0}]
  %s15 = inlined_call_operand.hbm [shape: f32[1,64], index: 15, kind: output, shape index: {1}]
  %s16 = inlined_call_operand.hbm [shape: f32[1,4], index: 16, kind: output, shape index: {2}]
  %17 = xla_tuple %s14, %s15, %s16
  %s18 = sld [smem:[#allocation0]]
  $region86: #{tpu_custom_call.1} parent=0
    _
  %s20 = ssub.s32 1, %s18
  %s21 = scalar_select 0, %s20, %s18
  $region1: #{tpu_custom_call.1} parent=0
    #allocation2 [shape = 'u8[512]{0}', space=smem, size = 0x200, scoped, tag = 'input window, operand 13, single buffered']
    #allocation3 [shape = 's32[1]{0}', space=sflag, size = 0x4, scoped, tag = 'scoped memory for tpu_custom_call.1']
    #allocation4 [shape = 's32[1]{0}', space=sflag, size = 0x4, scoped, tag = 'scoped memory for tpu_custom_call.1']
    #allocation5 [shape = 's32[1]{0}', space=sflag, size = 0x4, scoped, tag = 'scoped memory for tpu_custom_call.1']
    #allocation6 [shape = 'u8[512]{0}', space=vmem, size = 0x400, scoped, tag = 'output window, operand 0, single buffered']
    #allocation7 [shape = 'u8[512]{0}', space=vmem, size = 0x400, scoped, tag = 'output window, operand 1, single buffered']
    #allocation8 [shape = 's32[1]{0}', space=sflag, size = 0x4, scoped, tag = 'scoped memory for tpu_custom_call.1']
    #allocation9 [shape = 'u8[512]{0}', space=smem, size = 0x200, scoped, tag = 'output window, operand 2, single buffered']
    %22 = vsyncpa [#allocation5], 0
    %23 = vsyncpa [#allocation3], 0
    %24 = vsyncpa [#allocation8], 0
    %25 = vsyncpa [#allocation4], 0
    // Predicated region
    $region2: #{tpu_custom_call.1} parent=1 // pred_check
      _
    $region3: #{tpu_custom_call.1} parent=1 // pred_check_branch
      %27 = sbr.rel (0) target = $region5
    $region4: #{tpu_custom_call.1} parent=1 // pred_region
      _
    $region5: #{tpu_custom_call.1} parent=1 // pred_fallthru
      _
    // Predicated region
    $region6: #{tpu_custom_call.1} parent=1 // pred_check
      _
    $region7: #{tpu_custom_call.1} parent=1 // pred_check_branch
      %29 = sbr.rel (0) target = $region9
    $region8: #{tpu_custom_call.1} parent=1 // pred_region
      _
    $region9: #{tpu_custom_call.1} parent=1 // pred_fallthru
      _
    // Predicated region
    $region10: #{tpu_custom_call.1} parent=1 // pred_check
      _
    $region11: #{tpu_custom_call.1} parent=1 // pred_check_branch
      %31 = sbr.rel (0) target = $region13
    $region12: #{tpu_custom_call.1} parent=1 // pred_region
      _
    $region13: #{tpu_custom_call.1} parent=1 // pred_fallthru
      _
    // Predicated region
    $region14: #{tpu_custom_call.1} parent=1 // pred_check
      _
    $region15: #{tpu_custom_call.1} parent=1 // pred_check_branch
      %33 = sbr.rel (0) target = $region17
    $region16: #{tpu_custom_call.1} parent=1 // pred_region
      _
    $region17: #{tpu_custom_call.1} parent=1 // pred_fallthru
      _
    // Predicated region
    $region18: #{tpu_custom_call.1} parent=1 // pred_check
      _
    $region19: #{tpu_custom_call.1} parent=1 // pred_check_branch
      %35 = sbr.rel (0) target = $region21
    $region20: #{tpu_custom_call.1} parent=1 // pred_region
      _
    $region21: #{tpu_custom_call.1} parent=1 // pred_fallthru
      _
    // Predicated region
    $region22: #{tpu_custom_call.1} parent=1 // pred_check
      _
    $region23: #{tpu_custom_call.1} parent=1 // pred_check_branch
      %37 = sbr.rel (0) target = $region25
    $region24: #{tpu_custom_call.1} parent=1 // pred_region
      _
    $region25: #{tpu_custom_call.1} parent=1 // pred_fallthru
      _
    // Predicated region
    $region26: #{tpu_custom_call.1} parent=1 // pred_check
      _
    $region27: #{tpu_custom_call.1} parent=1 // pred_check_branch
      %39 = sbr.rel (0) target = $region29
    $region28: #{tpu_custom_call.1} parent=1 // pred_region
      _
    $region29: #{tpu_custom_call.1} parent=1 // pred_fallthru
      _
    // Predicated region
    $region30: #{tpu_custom_call.1} parent=1 // pred_check
      _
    $region31: #{tpu_custom_call.1} parent=1 // pred_check_branch
      %41 = sbr.rel (0) target = $region33
    $region32: #{tpu_custom_call.1} parent=1 // pred_region
      _
    $region33: #{tpu_custom_call.1} parent=1 // pred_fallthru
      _
    // Predicated region
    $region34: #{tpu_custom_call.1} parent=1 // pred_check
      _
    $region35: #{tpu_custom_call.1} parent=1 // pred_check_branch
      %43 = sbr.rel (0) target = $region37
    $region36: #{tpu_custom_call.1} parent=1 // pred_region
      _
    $region37: #{tpu_custom_call.1} parent=1 // pred_fallthru
      _
    // Predicated region
    $region38: #{tpu_custom_call.1} parent=1 // pred_check
      _
    $region39: #{tpu_custom_call.1} parent=1 // pred_check_branch
      %45 = sbr.rel (0) target = $region41
    $region40: #{tpu_custom_call.1} parent=1 // pred_region
      _
    $region41: #{tpu_custom_call.1} parent=1 // pred_fallthru
      _
    // Predicated region
    $region42: #{tpu_custom_call.1} parent=1 // pred_check
      _
    $region43: #{tpu_custom_call.1} parent=1 // pred_check_branch
      %47 = sbr.rel (0) target = $region45
    $region44: #{tpu_custom_call.1} parent=1 // pred_region
      _
    $region45: #{tpu_custom_call.1} parent=1 // pred_fallthru
      _
    // Predicated region
    $region46: #{tpu_custom_call.1} parent=1 // pred_check
      _
    $region47: #{tpu_custom_call.1} parent=1 // pred_check_branch
      %49 = sbr.rel (0) target = $region49
    $region48: #{tpu_custom_call.1} parent=1 // pred_region
      _
    $region49: #{tpu_custom_call.1} parent=1 // pred_fallthru
      _
    // Predicated region
    $region50: #{tpu_custom_call.1} parent=1 // pred_check
      _
    $region51: #{tpu_custom_call.1} parent=1 // pred_check_branch
      %51 = sbr.rel (0) target = $region53
    $region52: #{tpu_custom_call.1} parent=1 // pred_region
      _
    $region53: #{tpu_custom_call.1} parent=1 // pred_fallthru
      _
    // Predicated region
    $region54: #{tpu_custom_call.1} parent=1 // pred_check
      _
    $region55: #{tpu_custom_call.1} parent=1 // pred_check_branch
      %53 = sbr.rel (0) target = $region57
    $region56: #{tpu_custom_call.1} parent=1 // pred_region
      %55 = vsyncadd [#allocation5], 0
      %s57 = sshll.u32 %s13, 4
      %s58 = int_to_ptr.vmem [resolvable:$true] %s57
      %60 = dma.vmem_to_smem %s58, 16, [#allocation2], [#allocation5]
    $region57: #{tpu_custom_call.1} parent=1 // pred_fallthru
      _
    // Predicated region
    $region58: #{tpu_custom_call.1} parent=1 // pred_check
      _
    $region59: #{tpu_custom_call.1} parent=1 // pred_check_branch
      %62 = sbr.rel (0) target = $region61
    $region60: #{tpu_custom_call.1} parent=1 // pred_region
      %64 = dma.done [#allocation5], 16
    $region61: #{tpu_custom_call.1} parent=1 // pred_fallthru
      _
    %65 = sfence
    %v66 = vld [vmem:[%s0] sm:$0xff]
    %v67 = vld [vmem:[%s0 + $0x8] sm:$0xff]
    %v68 = vld [vmem:[%s0 + $0x10] sm:$0xff]
    %v69 = vld [vmem:[%s0 + $0x18] sm:$0xff]
    %v70 = vld [vmem:[%s0 + $0x20] sm:$0xff]
    %v71 = vld [vmem:[%s0 + $0x28] sm:$0xff]
    %v72 = vld [vmem:[%s0 + $0x30] sm:$0xff]
    %v73 = vld [vmem:[%s0 + $0x38] sm:$0xff]
    %v74 = vld [vmem:[%s3] sm:$0xff]
    %v75 = vld [vmem:[%s3 + $0x8] sm:$0xff]
    %v76 = vld [vmem:[%s3 + $0x10] sm:$0xff]
    %v77 = vld [vmem:[%s3 + $0x18] sm:$0xff]
    %v78 = vld [vmem:[%s4] sm:$0x3]
    %v80 = vperm.slane %v78, 0
    %v81 = vperm.slane %v78, 1
    %vm84 = vcmask 130048
    %v86 = vsel %vm84, %v66, 0
    %v89 = vsel %vm84, %v67, 0
    %v92 = vsel %vm84, %v68, 0
    %v95 = vsel %vm84, %v69, 0
    %v98 = vsel %vm84, %v70, 0
    %v101 = vsel %vm84, %v71, 0
    %v104 = vsel %vm84, %v72, 0
    %v107 = vsel %vm84, %v73, 0
    %109 = vmatpush.msra.mxu0 0.0
    %110 = vmatpush.msra.mxu0 0.0
    %111 = vmatpush.msra.mxu0 0.0
    %112 = vmatpush.msra.mxu0 0.0
    %113 = vmatpush.msra.mxu0 0.0
    %114 = vmatpush.msra.mxu0 0.0
    %115 = vmatpush.msra.mxu0 0.0
    %116 = vmatpush.msra.mxu0 0.0
    %117 = vmatpush.msra.mxu0 0.0
    %118 = vmatpush.msra.mxu0 0.0
    %119 = vmatpush.msra.mxu0 0.0
    %120 = vmatpush.msra.mxu0 0.0
    %121 = vmatpush.msra.mxu0 0.0
    %122 = vmatpush.msra.mxu0 0.0
    %123 = vmatpush.msra.mxu0 %v76
    %124 = vmatpush.msra.mxu0 %v74
    %125 = vmatmul.f32.gmra.mxu0 %v86
    %v126 = vpop.f32.mrf.mxu0
    %v127 = vadd.f32 %v80, %v126
    %128 = vmatmul.f32.gmra.mxu0 %v89
    %v129 = vpop.f32.mrf.mxu0
    %v130 = vadd.f32 %v80, %v129
    %131 = vmatmul.f32.gmra.mxu0 %v92
    %v132 = vpop.f32.mrf.mxu0
    %v133 = vadd.f32 %v80, %v132
    %134 = vmatmul.f32.gmra.mxu0 %v95
    %v135 = vpop.f32.mrf.mxu0
    %v136 = vadd.f32 %v80, %v135
    %137 = vmatmul.f32.gmra.mxu0 %v98
    %v138 = vpop.f32.mrf.mxu0
    %v139 = vadd.f32 %v80, %v138
    %140 = vmatmul.f32.gmra.mxu0 %v101
    %v141 = vpop.f32.mrf.mxu0
    %v142 = vadd.f32 %v80, %v141
    %143 = vmatmul.f32.gmra.mxu0 %v104
    %v144 = vpop.f32.mrf.mxu0
    %v145 = vadd.f32 %v80, %v144
    %146 = vmatmul.f32.gmra.mxu0 %v107
    %v147 = vpop.f32.mrf.mxu0
    %v148 = vadd.f32 %v80, %v147
    %149 = vdwg.mxu0
    %150 = vmatpush.msra.mxu0 0.0
    %151 = vmatpush.msra.mxu0 0.0
    %152 = vmatpush.msra.mxu0 0.0
    %153 = vmatpush.msra.mxu0 0.0
    %154 = vmatpush.msra.mxu0 0.0
    %155 = vmatpush.msra.mxu0 0.0
    %156 = vmatpush.msra.mxu0 0.0
    %157 = vmatpush.msra.mxu0 0.0
    %158 = vmatpush.msra.mxu0 0.0
    %159 = vmatpush.msra.mxu0 0.0
    %160 = vmatpush.msra.mxu0 0.0
    %161 = vmatpush.msra.mxu0 0.0
    %162 = vmatpush.msra.mxu0 0.0
    %163 = vmatpush.msra.mxu0 0.0
    %164 = vmatpush.msra.mxu0 %v77
    %165 = vmatpush.msra.mxu0 %v75
    %166 = vmatmul.f32.gmra.mxu0 %v86
    %v167 = vpop.f32.mrf.mxu0
    %v168 = vadd.f32 %v81, %v167
    %169 = vmatmul.f32.gmra.mxu0 %v89
    %v170 = vpop.f32.mrf.mxu0
    %v171 = vadd.f32 %v81, %v170
    %172 = vmatmul.f32.gmra.mxu0 %v92
    %v173 = vpop.f32.mrf.mxu0
    %v174 = vadd.f32 %v81, %v173
    %175 = vmatmul.f32.gmra.mxu0 %v95
    %v176 = vpop.f32.mrf.mxu0
    %v177 = vadd.f32 %v81, %v176
    %178 = vmatmul.f32.gmra.mxu0 %v98
    %v179 = vpop.f32.mrf.mxu0
    %v180 = vadd.f32 %v81, %v179
    %181 = vmatmul.f32.gmra.mxu0 %v101
    %v182 = vpop.f32.mrf.mxu0
    %v183 = vadd.f32 %v81, %v182
    %184 = vmatmul.f32.gmra.mxu0 %v104
    %v185 = vpop.f32.mrf.mxu0
    %v186 = vadd.f32 %v81, %v185
    %187 = vmatmul.f32.gmra.mxu0 %v107
    %v188 = vpop.f32.mrf.mxu0
    %v189 = vadd.f32 %v81, %v188
    %190 = vdwg.mxu0
    %v191 = vmax.f32 %v127, 0.0
    %v192 = vmax.f32 %v168, 0.0
    %v193 = vmax.f32 %v130, 0.0
    %v194 = vmax.f32 %v171, 0.0
    %v195 = vmax.f32 %v133, 0.0
    %v196 = vmax.f32 %v174, 0.0
    %v197 = vmax.f32 %v136, 0.0
    %v198 = vmax.f32 %v177, 0.0
    %v199 = vmax.f32 %v139, 0.0
    %v200 = vmax.f32 %v180, 0.0
    %v201 = vmax.f32 %v142, 0.0
    %v202 = vmax.f32 %v183, 0.0
    %v203 = vmax.f32 %v145, 0.0
    %v204 = vmax.f32 %v186, 0.0
    %v205 = vmax.f32 %v148, 0.0
    %v206 = vmax.f32 %v189, 0.0
    %v207 = vld [vmem:[%s5] sm:$0xff]
    %v208 = vld [vmem:[%s5 + $0x8] sm:$0xff]
    %v209 = vld [vmem:[%s5 + $0x10] sm:$0xff]
    %v210 = vld [vmem:[%s5 + $0x18] sm:$0xff]
    %v211 = vld [vmem:[%s5 + $0x20] sm:$0xff]
    %v212 = vld [vmem:[%s5 + $0x28] sm:$0xff]
    %v213 = vld [vmem:[%s5 + $0x30] sm:$0xff]
    %v214 = vld [vmem:[%s5 + $0x38] sm:$0xff]
    %v215 = vld [vmem:[%s5 + $0x40] sm:$0xff]
    %v216 = vld [vmem:[%s5 + $0x48] sm:$0xff]
    %v217 = vld [vmem:[%s5 + $0x50] sm:$0xff]
    %v218 = vld [vmem:[%s5 + $0x58] sm:$0xff]
    %v219 = vld [vmem:[%s5 + $0x60] sm:$0xff]
    %v220 = vld [vmem:[%s5 + $0x68] sm:$0xff]
    %v221 = vld [vmem:[%s5 + $0x70] sm:$0xff]
    %v222 = vld [vmem:[%s5 + $0x78] sm:$0xff]
    %v223 = vld [vmem:[%s5 + $0x80] sm:$0xff]
    %v224 = vld [vmem:[%s5 + $0x88] sm:$0xff]
    %v225 = vld [vmem:[%s5 + $0x90] sm:$0xff]
    %v226 = vld [vmem:[%s5 + $0x98] sm:$0xff]
    %v227 = vld [vmem:[%s5 + $0xa0] sm:$0xff]
    %v228 = vld [vmem:[%s5 + $0xa8] sm:$0xff]
    %v229 = vld [vmem:[%s5 + $0xb0] sm:$0xff]
    %v230 = vld [vmem:[%s5 + $0xb8] sm:$0xff]
    %v231 = vld [vmem:[%s5 + $0xc0] sm:$0xff]
    %v232 = vld [vmem:[%s5 + $0xc8] sm:$0xff]
    %v233 = vld [vmem:[%s5 + $0xd0] sm:$0xff]
    %v234 = vld [vmem:[%s5 + $0xd8] sm:$0xff]
    %v235 = vld [vmem:[%s5 + $0xe0] sm:$0xff]
    %v236 = vld [vmem:[%s5 + $0xe8] sm:$0xff]
    %v237 = vld [vmem:[%s5 + $0xf0] sm:$0xff]
    %v238 = vld [vmem:[%s5 + $0xf8] sm:$0xff]
    %v239 = vld [vmem:[%s6] sm:$0x1]
    %v241 = vperm.slane %v239, 0
    %243 = vmatpush.msra.mxu0 %v222
    %244 = vmatpush.msra.mxu0 %v221
    %245 = vmatpush.msra.mxu0 %v220
    %246 = vmatpush.msra.mxu0 %v219
    %247 = vmatpush.msra.mxu0 %v218
    %248 = vmatpush.msra.mxu0 %v217
    %249 = vmatpush.msra.mxu0 %v216
    %250 = vmatpush.msra.mxu0 %v215
    %251 = vmatpush.msra.mxu0 %v214
    %252 = vmatpush.msra.mxu0 %v213
    %253 = vmatpush.msra.mxu0 %v212
    %254 = vmatpush.msra.mxu0 %v211
    %255 = vmatpush.msra.mxu0 %v210
    %256 = vmatpush.msra.mxu0 %v209
    %257 = vmatpush.msra.mxu0 %v208
    %258 = vmatpush.msra.mxu0 %v207
    %259 = vmatmul.f32.gmra.mxu0 %v191
    %v260 = vpop.f32.mrf.mxu0
    %v261 = vadd.f32 %v241, %v260
    %262 = vmatmul.f32.gmra.mxu0 %v193
    %v263 = vpop.f32.mrf.mxu0
    %v264 = vadd.f32 %v241, %v263
    %265 = vmatmul.f32.gmra.mxu0 %v195
    %v266 = vpop.f32.mrf.mxu0
    %v267 = vadd.f32 %v241, %v266
    %268 = vmatmul.f32.gmra.mxu0 %v197
    %v269 = vpop.f32.mrf.mxu0
    %v270 = vadd.f32 %v241, %v269
    %271 = vmatmul.f32.gmra.mxu0 %v199
    %v272 = vpop.f32.mrf.mxu0
    %v273 = vadd.f32 %v241, %v272
    %274 = vmatmul.f32.gmra.mxu0 %v201
    %v275 = vpop.f32.mrf.mxu0
    %v276 = vadd.f32 %v241, %v275
    %277 = vmatmul.f32.gmra.mxu0 %v203
    %v278 = vpop.f32.mrf.mxu0
    %v279 = vadd.f32 %v241, %v278
    %280 = vmatmul.f32.gmra.mxu0 %v205
    %v281 = vpop.f32.mrf.mxu0
    %282 = vdwg.mxu0
    %283 = vmatpush.msra.mxu0 %v238
    %284 = vmatpush.msra.mxu0 %v237
    %285 = vmatpush.msra.mxu0 %v236
    %286 = vmatpush.msra.mxu0 %v235
    %287 = vmatpush.msra.mxu0 %v234
    %288 = vmatpush.msra.mxu0 %v233
    %289 = vmatpush.msra.mxu0 %v232
    %290 = vmatpush.msra.mxu0 %v231
    %291 = vmatpush.msra.mxu0 %v230
    %292 = vmatpush.msra.mxu0 %v229
    %293 = vmatpush.msra.mxu0 %v228
    %294 = vmatpush.msra.mxu0 %v227
    %295 = vmatpush.msra.mxu0 %v226
    %296 = vmatpush.msra.mxu0 %v225
    %297 = vmatpush.msra.mxu0 %v224
    %298 = vmatpush.msra.mxu0 %v223
    %299 = vmatmul.f32.gmra.mxu0 %v192
    %v300 = vpop.f32.mrf.mxu0
    %v301 = vadd.f32 %v261, %v300
    %302 = vmatmul.f32.gmra.mxu0 %v194
    %v303 = vpop.f32.mrf.mxu0
    %v304 = vadd.f32 %v264, %v303
    %305 = vmatmul.f32.gmra.mxu0 %v196
    %v306 = vpop.f32.mrf.mxu0
    %v307 = vadd.f32 %v267, %v306
    %308 = vmatmul.f32.gmra.mxu0 %v198
    %v309 = vpop.f32.mrf.mxu0
    %v310 = vadd.f32 %v270, %v309
    %311 = vmatmul.f32.gmra.mxu0 %v200
    %v312 = vpop.f32.mrf.mxu0
    %v313 = vadd.f32 %v273, %v312
    %314 = vmatmul.f32.gmra.mxu0 %v202
    %v315 = vpop.f32.mrf.mxu0
    %v316 = vadd.f32 %v276, %v315
    %317 = vmatmul.f32.gmra.mxu0 %v204
    %v318 = vpop.f32.mrf.mxu0
    %v319 = vadd.f32 %v279, %v318
    %320 = vmatmul.f32.gmra.mxu0 %v206
    %v321 = vpop.f32.mrf.mxu0
    %322 = vdwg.mxu0
    %v323 = vld [vmem:[%s7] sm:$0xff]
    %v324 = vld [vmem:[%s7 + $0x8] sm:$0xff]
    %v325 = vld [vmem:[%s7 + $0x10] sm:$0xff]
    %v326 = vld [vmem:[%s7 + $0x18] sm:$0xff]
    %v327 = vld [vmem:[%s8] sm:$0x1]
    %v329 = vperm.slane %v327, 0
    %vm330 = vcmask 261120
    %v332 = vsel %vm330, 0.0, 0
    %334 = vmatpush.msra.mxu0 0.0
    %335 = vmatpush.msra.mxu0 0.0
    %336 = vmatpush.msra.mxu0 0.0
    %337 = vmatpush.msra.mxu0 0.0
    %338 = vmatpush.msra.mxu0 0.0
    %339 = vmatpush.msra.mxu0 0.0
    %340 = vmatpush.msra.mxu0 0.0
    %341 = vmatpush.msra.mxu0 0.0
    %342 = vmatpush.msra.mxu0 0.0
    %343 = vmatpush.msra.mxu0 0.0
    %344 = vmatpush.msra.mxu0 0.0
    %345 = vmatpush.msra.mxu0 0.0
    %346 = vmatpush.msra.mxu0 %v326
    %347 = vmatpush.msra.mxu0 %v325
    %348 = vmatpush.msra.mxu0 %v324
    %349 = vmatpush.msra.mxu0 %v323
    %350 = vmatmul.f32.gmra.mxu0 %v332
    %v351 = vpop.f32.mrf.mxu0
    %v352 = vadd.f32 0.0, %v351
    %353 = vdwg.mxu0
    %v354 = vadd.f32 %v301, %v352
    %v355 = vxor.u32 %v354, 2147483648
    %v356 = vmul.f32 %v355, 1.442695
    %v357 = vpow.pop %v356
    %v358 = vadd.f32 %v357, 1.0
    %v359 = vrcp.pop %v358
    %v360 = vmul.f32 %v358, %v359
    %v361 = vsub.f32 1.0, %v360
    %v362 = vmul.f32 %v359, %v361
    %v363 = vadd.f32 %v359, %v362
    %vm364 = vweird.f32 %v358
    %vm365 = vweird.f32 %v359
    %vm366 = vmor %vm364, %vm365
    %v367 = vsel %vm366, %v359, %v363
    %v368 = vand.u32 2147483647, %v358
    %vm369 = vcmp.eq.f32.partialorder %v368, 8.507059e+37
    %v370 = vand.u32 %v358, 2147483648
    %v371 = vor.u32 1.1754944e-38, %v370
    %v372 = vsel %vm369, %v371, %v367
    %v373 = vmul.f32 1.0, %v372
    %374 = vrot.lane.b32.xlu0 %v329, 64
    %v375 = vpop.permute.xlu0 %374
    %v377 = vadd.f32 %v352, %v375
    %379 = vrot.lane.b32.xlu0 %v377, 64
    %v380 = vpop.permute.xlu0 %379
    %v382 = vmul.f32 %v373, %v380
    %384 = vrot.lane.b32.xlu0 %v382, 64
    %v385 = vpop.permute.xlu0 %384
    %v387 = vadd.f32 %v301, %v385
    %v388 = vtanh.pop %v387
    %v389 = vsub.f32 1.0, %v373
    %391 = vrot.lane.b32.xlu0 %v388, 96
    %v392 = vpop.permute.xlu0 %391
    %v394 = vmul.f32 %v389, %v392
    %v395 = vmul.f32 %v373, 0.0
    %v396 = vadd.f32 %v394, %v395
    %398 = vrot.lane.b32.xlu0 %v396, 96
    %v399 = vpop.permute.xlu0 %398
    %v400 = vsel %vm330, %v399, 0
    %402 = vmatpush.msra.mxu0 0.0
    %403 = vmatpush.msra.mxu0 0.0
    %404 = vmatpush.msra.mxu0 0.0
    %405 = vmatpush.msra.mxu0 0.0
    %406 = vmatpush.msra.mxu0 0.0
    %407 = vmatpush.msra.mxu0 0.0
    %408 = vmatpush.msra.mxu0 0.0
    %409 = vmatpush.msra.mxu0 0.0
    %410 = vmatpush.msra.mxu0 0.0
    %411 = vmatpush.msra.mxu0 0.0
    %412 = vmatpush.msra.mxu0 0.0
    %413 = vmatpush.msra.mxu0 0.0
    %414 = vmatpush.msra.mxu0 %v326
    %415 = vmatpush.msra.mxu0 %v325
    %416 = vmatpush.msra.mxu0 %v324
    %417 = vmatpush.msra.mxu0 %v323
    %418 = vmatmul.f32.gmra.mxu0 %v400
    %v419 = vpop.f32.mrf.mxu0
    %v420 = vadd.f32 0.0, %v419
    %421 = vdwg.mxu0
    %v422 = vadd.f32 %v304, %v420
    %v423 = vxor.u32 %v422, 2147483648
    %v424 = vmul.f32 %v423, 1.442695
    %v425 = vpow.pop %v424
    %v426 = vadd.f32 %v425, 1.0
    %v427 = vrcp.pop %v426
    %v428 = vmul.f32 %v426, %v427
    %v429 = vsub.f32 1.0, %v428
    %v430 = vmul.f32 %v427, %v429
    %v431 = vadd.f32 %v427, %v430
    %vm432 = vweird.f32 %v426
    %vm433 = vweird.f32 %v427
    %vm434 = vmor %vm432, %vm433
    %v435 = vsel %vm434, %v427, %v431
    %v436 = vand.u32 2147483647, %v426
    %vm437 = vcmp.eq.f32.partialorder %v436, 8.507059e+37
    %v438 = vand.u32 %v426, 2147483648
    %v439 = vor.u32 1.1754944e-38, %v438
    %v440 = vsel %vm437, %v439, %v435
    %v441 = vmul.f32 1.0, %v440
    %v442 = vadd.f32 %v420, %v375
    %444 = vrot.lane.b32.xlu0 %v442, 64
    %v445 = vpop.permute.xlu0 %444
    %v447 = vmul.f32 %v441, %v445
    %449 = vrot.lane.b32.xlu0 %v447, 64
    %v450 = vpop.permute.xlu0 %449
    %v452 = vadd.f32 %v304, %v450
    %v453 = vtanh.pop %v452
    %v454 = vsub.f32 1.0, %v441
    %456 = vrot.lane.b32.xlu0 %v453, 96
    %v457 = vpop.permute.xlu0 %456
    %v459 = vmul.f32 %v454, %v457
    %v460 = vmul.f32 %v441, %v396
    %v461 = vadd.f32 %v459, %v460
    %463 = vrot.lane.b32.xlu0 %v461, 96
    %v464 = vpop.permute.xlu0 %463
    %v465 = vsel %vm330, %v464, 0
    %467 = vmatpush.msra.mxu0 0.0
    %468 = vmatpush.msra.mxu0 0.0
    %469 = vmatpush.msra.mxu0 0.0
    %470 = vmatpush.msra.mxu0 0.0
    %471 = vmatpush.msra.mxu0 0.0
    %472 = vmatpush.msra.mxu0 0.0
    %473 = vmatpush.msra.mxu0 0.0
    %474 = vmatpush.msra.mxu0 0.0
    %475 = vmatpush.msra.mxu0 0.0
    %476 = vmatpush.msra.mxu0 0.0
    %477 = vmatpush.msra.mxu0 0.0
    %478 = vmatpush.msra.mxu0 0.0
    %479 = vmatpush.msra.mxu0 %v326
    %480 = vmatpush.msra.mxu0 %v325
    %481 = vmatpush.msra.mxu0 %v324
    %482 = vmatpush.msra.mxu0 %v323
    %483 = vmatmul.f32.gmra.mxu0 %v465
    %v484 = vpop.f32.mrf.mxu0
    %v485 = vadd.f32 0.0, %v484
    %486 = vdwg.mxu0
    %v487 = vadd.f32 %v307, %v485
    %v488 = vxor.u32 %v487, 2147483648
    %v489 = vmul.f32 %v488, 1.442695
    %v490 = vpow.pop %v489
    %v491 = vadd.f32 %v490, 1.0
    %v492 = vrcp.pop %v491
    %v493 = vmul.f32 %v491, %v492
    %v494 = vsub.f32 1.0, %v493
    %v495 = vmul.f32 %v492, %v494
    %v496 = vadd.f32 %v492, %v495
    %vm497 = vweird.f32 %v491
    %vm498 = vweird.f32 %v492
    %vm499 = vmor %vm497, %vm498
    %v500 = vsel %vm499, %v492, %v496
    %v501 = vand.u32 2147483647, %v491
    %vm502 = vcmp.eq.f32.partialorder %v501, 8.507059e+37
    %v503 = vand.u32 %v491, 2147483648
    %v504 = vor.u32 1.1754944e-38, %v503
    %v505 = vsel %vm502, %v504, %v500
    %v506 = vmul.f32 1.0, %v505
    %v507 = vadd.f32 %v485, %v375
    %509 = vrot.lane.b32.xlu0 %v507, 64
    %v510 = vpop.permute.xlu0 %509
    %v512 = vmul.f32 %v506, %v510
    %514 = vrot.lane.b32.xlu0 %v512, 64
    %v515 = vpop.permute.xlu0 %514
    %v517 = vadd.f32 %v307, %v515
    %v518 = vtanh.pop %v517
    %v519 = vsub.f32 1.0, %v506
    %521 = vrot.lane.b32.xlu0 %v518, 96
    %v522 = vpop.permute.xlu0 %521
    %v524 = vmul.f32 %v519, %v522
    %v525 = vmul.f32 %v506, %v461
    %v526 = vadd.f32 %v524, %v525
    %528 = vrot.lane.b32.xlu0 %v526, 96
    %v529 = vpop.permute.xlu0 %528
    %v530 = vsel %vm330, %v529, 0
    %532 = vmatpush.msra.mxu0 0.0
    %533 = vmatpush.msra.mxu0 0.0
    %534 = vmatpush.msra.mxu0 0.0
    %535 = vmatpush.msra.mxu0 0.0
    %536 = vmatpush.msra.mxu0 0.0
    %537 = vmatpush.msra.mxu0 0.0
    %538 = vmatpush.msra.mxu0 0.0
    %539 = vmatpush.msra.mxu0 0.0
    %540 = vmatpush.msra.mxu0 0.0
    %541 = vmatpush.msra.mxu0 0.0
    %542 = vmatpush.msra.mxu0 0.0
    %543 = vmatpush.msra.mxu0 0.0
    %544 = vmatpush.msra.mxu0 %v326
    %545 = vmatpush.msra.mxu0 %v325
    %546 = vmatpush.msra.mxu0 %v324
    %547 = vmatpush.msra.mxu0 %v323
    %548 = vmatmul.f32.gmra.mxu0 %v530
    %v549 = vpop.f32.mrf.mxu0
    %v550 = vadd.f32 0.0, %v549
    %551 = vdwg.mxu0
    %v552 = vadd.f32 %v310, %v550
    %v553 = vxor.u32 %v552, 2147483648
    %v554 = vmul.f32 %v553, 1.442695
    %v555 = vpow.pop %v554
    %v556 = vadd.f32 %v555, 1.0
    %v557 = vrcp.pop %v556
    %v558 = vmul.f32 %v556, %v557
    %v559 = vsub.f32 1.0, %v558
    %v560 = vmul.f32 %v557, %v559
    %v561 = vadd.f32 %v557, %v560
    %vm562 = vweird.f32 %v556
    %vm563 = vweird.f32 %v557
    %vm564 = vmor %vm562, %vm563
    %v565 = vsel %vm564, %v557, %v561
    %v566 = vand.u32 2147483647, %v556
    %vm567 = vcmp.eq.f32.partialorder %v566, 8.507059e+37
    %v568 = vand.u32 %v556, 2147483648
    %v569 = vor.u32 1.1754944e-38, %v568
    %v570 = vsel %vm567, %v569, %v565
    %v571 = vmul.f32 1.0, %v570
    %v572 = vadd.f32 %v550, %v375
    %574 = vrot.lane.b32.xlu0 %v572, 64
    %v575 = vpop.permute.xlu0 %574
    %v577 = vmul.f32 %v571, %v575
    %579 = vrot.lane.b32.xlu0 %v577, 64
    %v580 = vpop.permute.xlu0 %579
    %v582 = vadd.f32 %v310, %v580
    %v583 = vtanh.pop %v582
    %v584 = vsub.f32 1.0, %v571
    %586 = vrot.lane.b32.xlu0 %v583, 96
    %v587 = vpop.permute.xlu0 %586
    %v589 = vmul.f32 %v584, %v587
    %v590 = vmul.f32 %v571, %v526
    %v591 = vadd.f32 %v589, %v590
    %593 = vrot.lane.b32.xlu0 %v591, 96
    %v594 = vpop.permute.xlu0 %593
    %v595 = vsel %vm330, %v594, 0
    %597 = vmatpush.msra.mxu0 0.0
    %598 = vmatpush.msra.mxu0 0.0
    %599 = vmatpush.msra.mxu0 0.0
    %600 = vmatpush.msra.mxu0 0.0
    %601 = vmatpush.msra.mxu0 0.0
    %602 = vmatpush.msra.mxu0 0.0
    %603 = vmatpush.msra.mxu0 0.0
    %604 = vmatpush.msra.mxu0 0.0
    %605 = vmatpush.msra.mxu0 0.0
    %606 = vmatpush.msra.mxu0 0.0
    %607 = vmatpush.msra.mxu0 0.0
    %608 = vmatpush.msra.mxu0 0.0
    %609 = vmatpush.msra.mxu0 %v326
    %610 = vmatpush.msra.mxu0 %v325
    %611 = vmatpush.msra.mxu0 %v324
    %612 = vmatpush.msra.mxu0 %v323
    %613 = vmatmul.f32.gmra.mxu0 %v595
    %v614 = vpop.f32.mrf.mxu0
    %v615 = vadd.f32 0.0, %v614
    %616 = vdwg.mxu0
    %v617 = vadd.f32 %v313, %v615
    %v618 = vxor.u32 %v617, 2147483648
    %v619 = vmul.f32 %v618, 1.442695
    %v620 = vpow.pop %v619
    %v621 = vadd.f32 %v620, 1.0
    %v622 = vrcp.pop %v621
    %v623 = vmul.f32 %v621, %v622
    %v624 = vsub.f32 1.0, %v623
    %v625 = vmul.f32 %v622, %v624
    %v626 = vadd.f32 %v622, %v625
    %vm627 = vweird.f32 %v621
    %vm628 = vweird.f32 %v622
    %vm629 = vmor %vm627, %vm628
    %v630 = vsel %vm629, %v622, %v626
    %v631 = vand.u32 2147483647, %v621
    %vm632 = vcmp.eq.f32.partialorder %v631, 8.507059e+37
    %v633 = vand.u32 %v621, 2147483648
    %v634 = vor.u32 1.1754944e-38, %v633
    %v635 = vsel %vm632, %v634, %v630
    %v636 = vmul.f32 1.0, %v635
    %v637 = vadd.f32 %v615, %v375
    %639 = vrot.lane.b32.xlu0 %v637, 64
    %v640 = vpop.permute.xlu0 %639
    %v642 = vmul.f32 %v636, %v640
    %644 = vrot.lane.b32.xlu0 %v642, 64
    %v645 = vpop.permute.xlu0 %644
    %v647 = vadd.f32 %v313, %v645
    %v648 = vtanh.pop %v647
    %v649 = vsub.f32 1.0, %v636
    %651 = vrot.lane.b32.xlu0 %v648, 96
    %v652 = vpop.permute.xlu0 %651
    %v654 = vmul.f32 %v649, %v652
    %v655 = vmul.f32 %v636, %v591
    %v656 = vadd.f32 %v654, %v655
    %658 = vrot.lane.b32.xlu0 %v656, 96
    %v659 = vpop.permute.xlu0 %658
    %v660 = vsel %vm330, %v659, 0
    %662 = vmatpush.msra.mxu0 0.0
    %663 = vmatpush.msra.mxu0 0.0
    %664 = vmatpush.msra.mxu0 0.0
    %665 = vmatpush.msra.mxu0 0.0
    %666 = vmatpush.msra.mxu0 0.0
    %667 = vmatpush.msra.mxu0 0.0
    %668 = vmatpush.msra.mxu0 0.0
    %669 = vmatpush.msra.mxu0 0.0
    %670 = vmatpush.msra.mxu0 0.0
    %671 = vmatpush.msra.mxu0 0.0
    %672 = vmatpush.msra.mxu0 0.0
    %673 = vmatpush.msra.mxu0 0.0
    %674 = vmatpush.msra.mxu0 %v326
    %675 = vmatpush.msra.mxu0 %v325
    %676 = vmatpush.msra.mxu0 %v324
    %677 = vmatpush.msra.mxu0 %v323
    %678 = vmatmul.f32.gmra.mxu0 %v660
    %v679 = vpop.f32.mrf.mxu0
    %v680 = vadd.f32 0.0, %v679
    %681 = vdwg.mxu0
    %v682 = vadd.f32 %v316, %v680
    %v683 = vxor.u32 %v682, 2147483648
    %v684 = vmul.f32 %v683, 1.442695
    %v685 = vpow.pop %v684
    %v686 = vadd.f32 %v685, 1.0
    %v687 = vrcp.pop %v686
    %v688 = vmul.f32 %v686, %v687
    %v689 = vsub.f32 1.0, %v688
    %v690 = vmul.f32 %v687, %v689
    %v691 = vadd.f32 %v687, %v690
    %vm692 = vweird.f32 %v686
    %vm693 = vweird.f32 %v687
    %vm694 = vmor %vm692, %vm693
    %v695 = vsel %vm694, %v687, %v691
    %v696 = vand.u32 2147483647, %v686
    %vm697 = vcmp.eq.f32.partialorder %v696, 8.507059e+37
    %v698 = vand.u32 %v686, 2147483648
    %v699 = vor.u32 1.1754944e-38, %v698
    %v700 = vsel %vm697, %v699, %v695
    %v701 = vmul.f32 1.0, %v700
    %v702 = vadd.f32 %v680, %v375
    %704 = vrot.lane.b32.xlu0 %v702, 64
    %v705 = vpop.permute.xlu0 %704
    %v707 = vmul.f32 %v701, %v705
    %709 = vrot.lane.b32.xlu0 %v707, 64
    %v710 = vpop.permute.xlu0 %709
    %v712 = vadd.f32 %v316, %v710
    %v713 = vtanh.pop %v712
    %v714 = vsub.f32 1.0, %v701
    %716 = vrot.lane.b32.xlu0 %v713, 96
    %v717 = vpop.permute.xlu0 %716
    %v719 = vmul.f32 %v714, %v717
    %v720 = vmul.f32 %v701, %v656
    %v721 = vadd.f32 %v719, %v720
    %723 = vrot.lane.b32.xlu0 %v721, 96
    %v724 = vpop.permute.xlu0 %723
    %v725 = vsel %vm330, %v724, 0
    %727 = vmatpush.msra.mxu0 0.0
    %728 = vmatpush.msra.mxu0 0.0
    %729 = vmatpush.msra.mxu0 0.0
    %730 = vmatpush.msra.mxu0 0.0
    %731 = vmatpush.msra.mxu0 0.0
    %732 = vmatpush.msra.mxu0 0.0
    %733 = vmatpush.msra.mxu0 0.0
    %734 = vmatpush.msra.mxu0 0.0
    %735 = vmatpush.msra.mxu0 0.0
    %736 = vmatpush.msra.mxu0 0.0
    %737 = vmatpush.msra.mxu0 0.0
    %738 = vmatpush.msra.mxu0 0.0
    %739 = vmatpush.msra.mxu0 %v326
    %740 = vmatpush.msra.mxu0 %v325
    %741 = vmatpush.msra.mxu0 %v324
    %742 = vmatpush.msra.mxu0 %v323
    %743 = vmatmul.f32.gmra.mxu0 %v725
    %v744 = vpop.f32.mrf.mxu0
    %v745 = vadd.f32 0.0, %v744
    %746 = vdwg.mxu0
    %v747 = vadd.f32 %v319, %v745
    %v748 = vxor.u32 %v747, 2147483648
    %v749 = vmul.f32 %v748, 1.442695
    %v750 = vpow.pop %v749
    %v751 = vadd.f32 %v750, 1.0
    %v752 = vrcp.pop %v751
    %v753 = vmul.f32 %v751, %v752
    %v754 = vsub.f32 1.0, %v753
    %v755 = vmul.f32 %v752, %v754
    %v756 = vadd.f32 %v752, %v755
    %vm757 = vweird.f32 %v751
    %vm758 = vweird.f32 %v752
    %vm759 = vmor %vm757, %vm758
    %v760 = vsel %vm759, %v752, %v756
    %v761 = vand.u32 2147483647, %v751
    %vm762 = vcmp.eq.f32.partialorder %v761, 8.507059e+37
    %v763 = vand.u32 %v751, 2147483648
    %v764 = vor.u32 1.1754944e-38, %v763
    %v765 = vsel %vm762, %v764, %v760
    %v766 = vmul.f32 1.0, %v765
    %v767 = vadd.f32 %v745, %v375
    %769 = vrot.lane.b32.xlu0 %v767, 64
    %v770 = vpop.permute.xlu0 %769
    %v772 = vmul.f32 %v766, %v770
    %774 = vrot.lane.b32.xlu0 %v772, 64
    %v775 = vpop.permute.xlu0 %774
    %v777 = vadd.f32 %v319, %v775
    %v778 = vtanh.pop %v777
    %v779 = vsub.f32 1.0, %v766
    %781 = vrot.lane.b32.xlu0 %v778, 96
    %v782 = vpop.permute.xlu0 %781
    %v784 = vmul.f32 %v779, %v782
    %v785 = vmul.f32 %v766, %v721
    %v786 = vadd.f32 %v784, %v785
    %788 = vrot.lane.b32.xlu0 %v786, 96
    %v789 = vpop.permute.xlu0 %788
    %v790 = vld [vmem:[%s9] sm:$0xff]
    %v791 = vld [vmem:[%s9 + $0x8] sm:$0xff]
    %v792 = vld [vmem:[%s9 + $0x10] sm:$0xff]
    %v793 = vld [vmem:[%s9 + $0x18] sm:$0xff]
    %v794 = vld [vmem:[%s10] sm:$0x1]
    %v796 = vperm.slane %v794, 0
    %v798 = vsel %vm330, %v789, 0
    %800 = vmatpush.msra.mxu0 0.0
    %801 = vmatpush.msra.mxu0 0.0
    %802 = vmatpush.msra.mxu0 0.0
    %803 = vmatpush.msra.mxu0 0.0
    %804 = vmatpush.msra.mxu0 0.0
    %805 = vmatpush.msra.mxu0 0.0
    %806 = vmatpush.msra.mxu0 0.0
    %807 = vmatpush.msra.mxu0 0.0
    %808 = vmatpush.msra.mxu0 0.0
    %809 = vmatpush.msra.mxu0 0.0
    %810 = vmatpush.msra.mxu0 0.0
    %811 = vmatpush.msra.mxu0 0.0
    %812 = vmatpush.msra.mxu0 %v793
    %813 = vmatpush.msra.mxu0 %v792
    %814 = vmatpush.msra.mxu0 %v791
    %815 = vmatpush.msra.mxu0 %v790
    %816 = vmatmul.f32.gmra.mxu0 %v332
    %v817 = vpop.f32.mrf.mxu0
    %v818 = vadd.f32 %v796, %v817
    %819 = vmatmul.f32.gmra.mxu0 %v400
    %v820 = vpop.f32.mrf.mxu0
    %v821 = vadd.f32 %v796, %v820
    %822 = vmatmul.f32.gmra.mxu0 %v465
    %v823 = vpop.f32.mrf.mxu0
    %v824 = vadd.f32 %v796, %v823
    %825 = vmatmul.f32.gmra.mxu0 %v530
    %v826 = vpop.f32.mrf.mxu0
    %v827 = vadd.f32 %v796, %v826
    %828 = vmatmul.f32.gmra.mxu0 %v595
    %v829 = vpop.f32.mrf.mxu0
    %v830 = vadd.f32 %v796, %v829
    %831 = vmatmul.f32.gmra.mxu0 %v660
    %v832 = vpop.f32.mrf.mxu0
    %v833 = vadd.f32 %v796, %v832
    %834 = vmatmul.f32.gmra.mxu0 %v725
    %v835 = vpop.f32.mrf.mxu0
    %v836 = vadd.f32 %v796, %v835
    %837 = vmatmul.f32.gmra.mxu0 %v798
    %v838 = vpop.f32.mrf.mxu0
    %v839 = vadd.f32 %v796, %v838
    %840 = vdwg.mxu0
    %v841 = vmax.f32 %v818, 0.0
    %v842 = vmax.f32 %v821, 0.0
    %v843 = vmax.f32 %v824, 0.0
    %v844 = vmax.f32 %v827, 0.0
    %v845 = vmax.f32 %v830, 0.0
    %v846 = vmax.f32 %v833, 0.0
    %v847 = vmax.f32 %v836, 0.0
    %v848 = vmax.f32 %v839, 0.0
    %v849 = vld [vmem:[%s11] sm:$0xff]
    %v850 = vld [vmem:[%s11 + $0x8] sm:$0xff]
    %v851 = vld [vmem:[%s11 + $0x10] sm:$0xff]
    %v852 = vld [vmem:[%s11 + $0x18] sm:$0xff]
    %v853 = vld [vmem:[%s11 + $0x20] sm:$0xff]
    %v854 = vld [vmem:[%s11 + $0x28] sm:$0xff]
    %v855 = vld [vmem:[%s11 + $0x30] sm:$0xff]
    %v856 = vld [vmem:[%s11 + $0x38] sm:$0xff]
    %v857 = vld [vmem:[%s11 + $0x40] sm:$0xff]
    %v858 = vld [vmem:[%s11 + $0x48] sm:$0xff]
    %v859 = vld [vmem:[%s11 + $0x50] sm:$0xff]
    %v860 = vld [vmem:[%s11 + $0x58] sm:$0xff]
    %v861 = vld [vmem:[%s11 + $0x60] sm:$0xff]
    %v862 = vld [vmem:[%s11 + $0x68] sm:$0xff]
    %v863 = vld [vmem:[%s11 + $0x70] sm:$0xff]
    %v864 = vld [vmem:[%s11 + $0x78] sm:$0xff]
    %v865 = vld [vmem:[%s12] sm:$0x1]
    %v867 = vperm.slane %v865, 0
    %869 = vmatpush.msra.mxu0 %v864
    %870 = vmatpush.msra.mxu0 %v863
    %871 = vmatpush.msra.mxu0 %v862
    %872 = vmatpush.msra.mxu0 %v861
    %873 = vmatpush.msra.mxu0 %v860
    %874 = vmatpush.msra.mxu0 %v859
    %875 = vmatpush.msra.mxu0 %v858
    %876 = vmatpush.msra.mxu0 %v857
    %877 = vmatpush.msra.mxu0 %v856
    %878 = vmatpush.msra.mxu0 %v855
    %879 = vmatpush.msra.mxu0 %v854
    %880 = vmatpush.msra.mxu0 %v853
    %881 = vmatpush.msra.mxu0 %v852
    %882 = vmatpush.msra.mxu0 %v851
    %883 = vmatpush.msra.mxu0 %v850
    %884 = vmatpush.msra.mxu0 %v849
    %885 = vmatmul.f32.gmra.mxu0 %v841
    %v886 = vpop.f32.mrf.mxu0
    %v887 = vadd.f32 %v867, %v886
    %888 = vmatmul.f32.gmra.mxu0 %v842
    %v889 = vpop.f32.mrf.mxu0
    %v890 = vadd.f32 %v867, %v889
    %891 = vmatmul.f32.gmra.mxu0 %v843
    %v892 = vpop.f32.mrf.mxu0
    %v893 = vadd.f32 %v867, %v892
    %894 = vmatmul.f32.gmra.mxu0 %v844
    %v895 = vpop.f32.mrf.mxu0
    %v896 = vadd.f32 %v867, %v895
    %897 = vmatmul.f32.gmra.mxu0 %v845
    %v898 = vpop.f32.mrf.mxu0
    %v899 = vadd.f32 %v867, %v898
    %900 = vmatmul.f32.gmra.mxu0 %v846
    %v901 = vpop.f32.mrf.mxu0
    %v902 = vadd.f32 %v867, %v901
    %903 = vmatmul.f32.gmra.mxu0 %v847
    %v904 = vpop.f32.mrf.mxu0
    %v905 = vadd.f32 %v867, %v904
    %906 = vmatmul.f32.gmra.mxu0 %v848
    %v907 = vpop.f32.mrf.mxu0
    %v908 = vadd.f32 %v867, %v907
    %909 = vdwg.mxu0
    %v910 = vmul.f32 %v887, 0.5
    %v911 = vmul.f32 %v890, 0.5
    %v912 = vmul.f32 %v893, 0.5
    %v913 = vmul.f32 %v896, 0.5
    %v914 = vmul.f32 %v899, 0.5
    %v915 = vmul.f32 %v902, 0.5
    %v916 = vmul.f32 %v905, 0.5
    %v917 = vmul.f32 %v908, 0.5
    %v918 = vmul.f32 %v910, 1.442695
    %v919 = vpow.pop %v918
    %v920 = vmul.f32 %v911, 1.442695
    %v921 = vpow.pop %v920
    %v922 = vmul.f32 %v912, 1.442695
    %v923 = vpow.pop %v922
    %v924 = vmul.f32 %v913, 1.442695
    %v925 = vpow.pop %v924
    %v926 = vmul.f32 %v914, 1.442695
    %v927 = vpow.pop %v926
    %v928 = vmul.f32 %v915, 1.442695
    %v929 = vpow.pop %v928
    %v930 = vmul.f32 %v916, 1.442695
    %v931 = vpow.pop %v930
    %v932 = vmul.f32 %v917, 1.442695
    %v933 = vpow.pop %v932
    %v934 = vadd.f32 %v919, 0.01
    %v935 = vadd.f32 %v921, 0.01
    %v936 = vadd.f32 %v923, 0.01
    %v937 = vadd.f32 %v925, 0.01
    %v938 = vadd.f32 %v927, 0.01
    %v939 = vadd.f32 %v929, 0.01
    %v940 = vadd.f32 %v931, 0.01
    %v941 = vadd.f32 %v933, 0.01
    %v942 = vsub.f32 %v66, %v887
    %v943 = vsub.f32 %v67, %v890
    %v944 = vsub.f32 %v68, %v893
    %v945 = vsub.f32 %v69, %v896
    %v946 = vsub.f32 %v70, %v899
    %v947 = vsub.f32 %v71, %v902
    %v948 = vsub.f32 %v72, %v905
    %v949 = vsub.f32 %v73, %v908
    %958 = vrot.lane.b32.xlu0 %v934, 112
    %v959 = vpop.permute.xlu0 %958
    %960 = vrot.lane.b32.xlu0 %v935, 112
    %v961 = vpop.permute.xlu0 %960
    %962 = vrot.lane.b32.xlu0 %v936, 112
    %v963 = vpop.permute.xlu0 %962
    %964 = vrot.lane.b32.xlu0 %v937, 112
    %v965 = vpop.permute.xlu0 %964
    %966 = vrot.lane.b32.xlu0 %v938, 112
    %v967 = vpop.permute.xlu0 %966
    %968 = vrot.lane.b32.xlu0 %v939, 112
    %v969 = vpop.permute.xlu0 %968
    %970 = vrot.lane.b32.xlu0 %v940, 112
    %v971 = vpop.permute.xlu0 %970
    %972 = vrot.lane.b32.xlu0 %v941, 112
    %v973 = vpop.permute.xlu0 %972
    %v982 = vrcp.pop %v959
    %v983 = vmul.f32 %v959, %v982
    %v984 = vsub.f32 1.0, %v983
    %v985 = vmul.f32 %v982, %v984
    %v986 = vadd.f32 %v982, %v985
    %vm987 = vweird.f32 %v959
    %vm988 = vweird.f32 %v982
    %vm989 = vmor %vm987, %vm988
    %v990 = vsel %vm989, %v982, %v986
    %v991 = vand.u32 2147483647, %v959
    %vm992 = vcmp.eq.f32.partialorder %v991, 8.507059e+37
    %v993 = vand.u32 %v959, 2147483648
    %v994 = vor.u32 1.1754944e-38, %v993
    %v995 = vsel %vm992, %v994, %v990
    %v996 = vmul.f32 %v942, %v995
    %v997 = vrcp.pop %v961
    %v998 = vmul.f32 %v961, %v997
    %v999 = vsub.f32 1.0, %v998
    %v1000 = vmul.f32 %v997, %v999
    %v1001 = vadd.f32 %v997, %v1000
    %vm1002 = vweird.f32 %v961
    %vm1003 = vweird.f32 %v997
    %vm1004 = vmor %vm1002, %vm1003
    %v1005 = vsel %vm1004, %v997, %v1001
    %v1006 = vand.u32 2147483647, %v961
    %vm1007 = vcmp.eq.f32.partialorder %v1006, 8.507059e+37
    %v1008 = vand.u32 %v961, 2147483648
    %v1009 = vor.u32 1.1754944e-38, %v1008
    %v1010 = vsel %vm1007, %v1009, %v1005
    %v1011 = vmul.f32 %v943, %v1010
    %v1012 = vrcp.pop %v963
    %v1013 = vmul.f32 %v963, %v1012
    %v1014 = vsub.f32 1.0, %v1013
    %v1015 = vmul.f32 %v1012, %v1014
    %v1016 = vadd.f32 %v1012, %v1015
    %vm1017 = vweird.f32 %v963
    %vm1018 = vweird.f32 %v1012
    %vm1019 = vmor %vm1017, %vm1018
    %v1020 = vsel %vm1019, %v1012, %v1016
    %v1021 = vand.u32 2147483647, %v963
    %vm1022 = vcmp.eq.f32.partialorder %v1021, 8.507059e+37
    %v1023 = vand.u32 %v963, 2147483648
    %v1024 = vor.u32 1.1754944e-38, %v1023
    %v1025 = vsel %vm1022, %v1024, %v1020
    %v1026 = vmul.f32 %v944, %v1025
    %v1027 = vrcp.pop %v965
    %v1028 = vmul.f32 %v965, %v1027
    %v1029 = vsub.f32 1.0, %v1028
    %v1030 = vmul.f32 %v1027, %v1029
    %v1031 = vadd.f32 %v1027, %v1030
    %vm1032 = vweird.f32 %v965
    %vm1033 = vweird.f32 %v1027
    %vm1034 = vmor %vm1032, %vm1033
    %v1035 = vsel %vm1034, %v1027, %v1031
    %v1036 = vand.u32 2147483647, %v965
    %vm1037 = vcmp.eq.f32.partialorder %v1036, 8.507059e+37
    %v1038 = vand.u32 %v965, 2147483648
    %v1039 = vor.u32 1.1754944e-38, %v1038
    %v1040 = vsel %vm1037, %v1039, %v1035
    %v1041 = vmul.f32 %v945, %v1040
    %v1042 = vrcp.pop %v967
    %v1043 = vmul.f32 %v967, %v1042
    %v1044 = vsub.f32 1.0, %v1043
    %v1045 = vmul.f32 %v1042, %v1044
    %v1046 = vadd.f32 %v1042, %v1045
    %vm1047 = vweird.f32 %v967
    %vm1048 = vweird.f32 %v1042
    %vm1049 = vmor %vm1047, %vm1048
    %v1050 = vsel %vm1049, %v1042, %v1046
    %v1051 = vand.u32 2147483647, %v967
    %vm1052 = vcmp.eq.f32.partialorder %v1051, 8.507059e+37
    %v1053 = vand.u32 %v967, 2147483648
    %v1054 = vor.u32 1.1754944e-38, %v1053
    %v1055 = vsel %vm1052, %v1054, %v1050
    %v1056 = vmul.f32 %v946, %v1055
    %v1057 = vrcp.pop %v969
    %v1058 = vmul.f32 %v969, %v1057
    %v1059 = vsub.f32 1.0, %v1058
    %v1060 = vmul.f32 %v1057, %v1059
    %v1061 = vadd.f32 %v1057, %v1060
    %vm1062 = vweird.f32 %v969
    %vm1063 = vweird.f32 %v1057
    %vm1064 = vmor %vm1062, %vm1063
    %v1065 = vsel %vm1064, %v1057, %v1061
    %v1066 = vand.u32 2147483647, %v969
    %vm1067 = vcmp.eq.f32.partialorder %v1066, 8.507059e+37
    %v1068 = vand.u32 %v969, 2147483648
    %v1069 = vor.u32 1.1754944e-38, %v1068
    %v1070 = vsel %vm1067, %v1069, %v1065
    %v1071 = vmul.f32 %v947, %v1070
    %v1072 = vrcp.pop %v971
    %v1073 = vmul.f32 %v971, %v1072
    %v1074 = vsub.f32 1.0, %v1073
    %v1075 = vmul.f32 %v1072, %v1074
    %v1076 = vadd.f32 %v1072, %v1075
    %vm1077 = vweird.f32 %v971
    %vm1078 = vweird.f32 %v1072
    %vm1079 = vmor %vm1077, %vm1078
    %v1080 = vsel %vm1079, %v1072, %v1076
    %v1081 = vand.u32 2147483647, %v971
    %vm1082 = vcmp.eq.f32.partialorder %v1081, 8.507059e+37
    %v1083 = vand.u32 %v971, 2147483648
    %v1084 = vor.u32 1.1754944e-38, %v1083
    %v1085 = vsel %vm1082, %v1084, %v1080
    %v1086 = vmul.f32 %v948, %v1085
    %v1087 = vrcp.pop %v973
    %v1088 = vmul.f32 %v973, %v1087
    %v1089 = vsub.f32 1.0, %v1088
    %v1090 = vmul.f32 %v1087, %v1089
    %v1091 = vadd.f32 %v1087, %v1090
    %vm1092 = vweird.f32 %v973
    %vm1093 = vweird.f32 %v1087
    %vm1094 = vmor %vm1092, %vm1093
    %v1095 = vsel %vm1094, %v1087, %v1091
    %v1096 = vand.u32 2147483647, %v973
    %vm1097 = vcmp.eq.f32.partialorder %v1096, 8.507059e+37
    %v1098 = vand.u32 %v973, 2147483648
    %v1099 = vor.u32 1.1754944e-38, %v1098
    %v1100 = vsel %vm1097, %v1099, %v1095
    %v1101 = vmul.f32 %v949, %v1100
    %v1102 = vmul.f32 %v996, %v996
    %v1103 = vmul.f32 %v1011, %v1011
    %v1104 = vmul.f32 %v1026, %v1026
    %v1105 = vmul.f32 %v1041, %v1041
    %v1106 = vmul.f32 %v1056, %v1056
    %v1107 = vmul.f32 %v1071, %v1071
    %v1108 = vmul.f32 %v1086, %v1086
    %v1109 = vmul.f32 %v1101, %v1101
    %v1110 = vmul.f32 %v1102, -0.5
    %v1111 = vmul.f32 %v1103, -0.5
    %v1112 = vmul.f32 %v1104, -0.5
    %v1113 = vmul.f32 %v1105, -0.5
    %v1114 = vmul.f32 %v1106, -0.5
    %v1115 = vmul.f32 %v1107, -0.5
    %v1116 = vmul.f32 %v1108, -0.5
    %v1117 = vmul.f32 %v1109, -0.5
    %v1118 = vlog2.pop %v934
    %v1119 = vmul.f32 %v1118, 0.6931472
    %v1120 = vlog2.pop %v935
    %v1121 = vmul.f32 %v1120, 0.6931472
    %v1122 = vlog2.pop %v936
    %v1123 = vmul.f32 %v1122, 0.6931472
    %v1124 = vlog2.pop %v937
    %v1125 = vmul.f32 %v1124, 0.6931472
    %v1126 = vlog2.pop %v938
    %v1127 = vmul.f32 %v1126, 0.6931472
    %v1128 = vlog2.pop %v939
    %v1129 = vmul.f32 %v1128, 0.6931472
    %v1130 = vlog2.pop %v940
    %v1131 = vmul.f32 %v1130, 0.6931472
    %v1132 = vlog2.pop %v941
    %v1133 = vmul.f32 %v1132, 0.6931472
    %1142 = vrot.lane.b32.xlu0 %v1119, 112
    %v1143 = vpop.permute.xlu0 %1142
    %1144 = vrot.lane.b32.xlu0 %v1121, 112
    %v1145 = vpop.permute.xlu0 %1144
    %1146 = vrot.lane.b32.xlu0 %v1123, 112
    %v1147 = vpop.permute.xlu0 %1146
    %1148 = vrot.lane.b32.xlu0 %v1125, 112
    %v1149 = vpop.permute.xlu0 %1148
    %1150 = vrot.lane.b32.xlu0 %v1127, 112
    %v1151 = vpop.permute.xlu0 %1150
    %1152 = vrot.lane.b32.xlu0 %v1129, 112
    %v1153 = vpop.permute.xlu0 %1152
    %1154 = vrot.lane.b32.xlu0 %v1131, 112
    %v1155 = vpop.permute.xlu0 %1154
    %1156 = vrot.lane.b32.xlu0 %v1133, 112
    %v1157 = vpop.permute.xlu0 %1156
    %v1166 = vsub.f32 %v1110, %v1143
    %v1167 = vsub.f32 %v1111, %v1145
    %v1168 = vsub.f32 %v1112, %v1147
    %v1169 = vsub.f32 %v1113, %v1149
    %v1170 = vsub.f32 %v1114, %v1151
    %v1171 = vsub.f32 %v1115, %v1153
    %v1172 = vsub.f32 %v1116, %v1155
    %v1173 = vsub.f32 %v1117, %v1157
    %v1174 = vsub.f32 %v1166, 0.9189385
    %v1175 = vsub.f32 %v1167, 0.9189385
    %v1176 = vsub.f32 %v1168, 0.9189385
    %v1177 = vsub.f32 %v1169, 0.9189385
    %v1178 = vsub.f32 %v1170, 0.9189385
    %v1179 = vsub.f32 %v1171, 0.9189385
    %v1180 = vsub.f32 %v1172, 0.9189385
    %v1181 = vsub.f32 %v1173, 0.9189385
    %v1182 = vsel %vm84, %v1174, 0.0
    %1183 = vadd.xlane.f32.xlu0 %v1182
    %v1184 = vpop.xlane.xlu0 %1183
    %v1185 = vsel %vm84, %v1175, 0.0
    %1186 = vadd.xlane.f32.xlu0 %v1185
    %v1187 = vpop.xlane.xlu0 %1186
    %v1188 = vsel %vm84, %v1176, 0.0
    %1189 = vadd.xlane.f32.xlu0 %v1188
    %v1190 = vpop.xlane.xlu0 %1189
    %v1191 = vsel %vm84, %v1177, 0.0
    %1192 = vadd.xlane.f32.xlu0 %v1191
    %v1193 = vpop.xlane.xlu0 %1192
    %v1194 = vsel %vm84, %v1178, 0.0
    %1195 = vadd.xlane.f32.xlu0 %v1194
    %v1196 = vpop.xlane.xlu0 %1195
    %v1197 = vsel %vm84, %v1179, 0.0
    %1198 = vadd.xlane.f32.xlu0 %v1197
    %v1199 = vpop.xlane.xlu0 %1198
    %v1200 = vsel %vm84, %v1180, 0.0
    %1201 = vadd.xlane.f32.xlu0 %v1200
    %v1202 = vpop.xlane.xlu0 %1201
    %v1203 = vsel %vm84, %v1181, 0.0
    %1204 = vadd.xlane.f32.xlu0 %v1203
    %v1205 = vpop.xlane.xlu0 %1204
    %v1206 = vsub.f32 %v887, %v66
    %v1207 = vsub.f32 %v890, %v67
    %v1208 = vsub.f32 %v893, %v68
    %v1209 = vsub.f32 %v896, %v69
    %v1210 = vsub.f32 %v899, %v70
    %v1211 = vsub.f32 %v902, %v71
    %v1212 = vsub.f32 %v905, %v72
    %v1213 = vsub.f32 %v908, %v73
    %v1214 = vmul.f32 %v1206, %v1206
    %v1215 = vmul.f32 %v1207, %v1207
    %v1216 = vmul.f32 %v1208, %v1208
    %v1217 = vmul.f32 %v1209, %v1209
    %v1218 = vmul.f32 %v1210, %v1210
    %v1219 = vmul.f32 %v1211, %v1211
    %v1220 = vmul.f32 %v1212, %v1212
    %v1221 = vmul.f32 %v1213, %v1213
    %v1222 = vsel %vm84, %v1214, 0.0
    %1223 = vadd.xlane.f32.xlu0 %v1222
    %v1224 = vpop.xlane.xlu0 %1223
    %v1225 = vsel %vm84, %v1215, 0.0
    %1226 = vadd.xlane.f32.xlu0 %v1225
    %v1227 = vpop.xlane.xlu0 %1226
    %v1228 = vsel %vm84, %v1216, 0.0
    %1229 = vadd.xlane.f32.xlu0 %v1228
    %v1230 = vpop.xlane.xlu0 %1229
    %v1231 = vsel %vm84, %v1217, 0.0
    %1232 = vadd.xlane.f32.xlu0 %v1231
    %v1233 = vpop.xlane.xlu0 %1232
    %v1234 = vsel %vm84, %v1218, 0.0
    %1235 = vadd.xlane.f32.xlu0 %v1234
    %v1236 = vpop.xlane.xlu0 %1235
    %v1237 = vsel %vm84, %v1219, 0.0
    %1238 = vadd.xlane.f32.xlu0 %v1237
    %v1239 = vpop.xlane.xlu0 %1238
    %v1240 = vsel %vm84, %v1220, 0.0
    %1241 = vadd.xlane.f32.xlu0 %v1240
    %v1242 = vpop.xlane.xlu0 %1241
    %v1243 = vsel %vm84, %v1221, 0.0
    %1244 = vadd.xlane.f32.xlu0 %v1243
    %v1245 = vpop.xlane.xlu0 %1244
    %v1246 = vlaneseq
    %v1247 = vshrl.u32 %v1246, 7
    %v1248 = vadd.s32 %v1247, 8
    %v1249 = vadd.s32 %v1247, 16
    %v1250 = vadd.s32 %v1247, 24
    %v1251 = vadd.s32 %v1247, 32
    %v1252 = vadd.s32 %v1247, 40
    %v1253 = vadd.s32 %v1247, 48
    %v1254 = vadd.s32 %v1247, 56
    %v1255 = vlaneseq
    %v1256 = vand.u32 %v1255, 127
    %vm1257 = vcmp.eq.s32.totalorder %v1247, %v1256
    %vm1258 = vcmp.eq.s32.totalorder %v1248, %v1256
    %vm1259 = vcmp.eq.s32.totalorder %v1249, %v1256
    %vm1260 = vcmp.eq.s32.totalorder %v1250, %v1256
    %vm1261 = vcmp.eq.s32.totalorder %v1251, %v1256
    %vm1262 = vcmp.eq.s32.totalorder %v1252, %v1256
    %vm1263 = vcmp.eq.s32.totalorder %v1253, %v1256
    %vm1264 = vcmp.eq.s32.totalorder %v1254, %v1256
    %v1265 = vsel %vm1257, 1, 0
    %v1266 = vsel %vm1258, 1, 0
    %v1267 = vsel %vm1259, 1, 0
    %v1268 = vsel %vm1260, 1, 0
    %v1269 = vsel %vm1261, 1, 0
    %v1270 = vsel %vm1262, 1, 0
    %v1271 = vsel %vm1263, 1, 0
    %v1272 = vsel %vm1264, 1, 0
    %v1273 = vcvt.s32.f32 %v1265
    %v1274 = vcvt.s32.f32 %v1266
    %v1275 = vcvt.s32.f32 %v1267
    %v1276 = vcvt.s32.f32 %v1268
    %v1277 = vcvt.s32.f32 %v1269
    %v1278 = vcvt.s32.f32 %v1270
    %v1279 = vcvt.s32.f32 %v1271
    %v1280 = vcvt.s32.f32 %v1272
    %v1281 = vmul.f32 %v1184, %v1273
    %v1282 = vmul.f32 %v1187, %v1274
    %v1283 = vmul.f32 %v1190, %v1275
    %v1284 = vmul.f32 %v1193, %v1276
    %v1285 = vmul.f32 %v1196, %v1277
    %v1286 = vmul.f32 %v1199, %v1278
    %v1287 = vmul.f32 %v1202, %v1279
    %v1288 = vmul.f32 %v1205, %v1280
    %vm1289 = vcmask 523264
    %v1290 = vsel %vm1289, %v1281, 0.0
    %v1291 = vsel %vm1289, %v1282, 0.0
    %v1292 = vadd.f32 %v1290, %v1291
    %v1293 = vsel %vm1289, %v1283, 0.0
    %v1294 = vadd.f32 %v1292, %v1293
    %v1295 = vsel %vm1289, %v1284, 0.0
    %v1296 = vadd.f32 %v1294, %v1295
    %v1297 = vsel %vm1289, %v1285, 0.0
    %v1298 = vadd.f32 %v1296, %v1297
    %v1299 = vsel %vm1289, %v1286, 0.0
    %v1300 = vadd.f32 %v1298, %v1299
    %v1301 = vsel %vm1289, %v1287, 0.0
    %v1302 = vadd.f32 %v1300, %v1301
    %v1303 = vsel %vm1289, %v1288, 0.0
    %v1304 = vadd.f32 %v1302, %v1303
    %v1305 = vrot.slane %v1304, 4
    %v1306 = vadd.f32 %v1304, %v1305
    %v1307 = vrot.slane %v1306, 2
    %v1308 = vadd.f32 %v1306, %v1307
    %v1309 = vrot.slane %v1308, 1
    %v1310 = vadd.f32 %v1308, %v1309
    %1312 = vset.pattern.permute.xlu0 32
    %1313 = vperm.xlu0 %1312, %v887
    %v1314 = vpop.permute.xlu0 %1313
    %1317 = vset.pattern.permute.xlu0 32
    %1318 = vperm.xlu0 %1317, %v890
    %v1319 = vpop.permute.xlu0 %1318
    %1322 = vset.pattern.permute.xlu0 32
    %1323 = vperm.xlu0 %1322, %v893
    %v1324 = vpop.permute.xlu0 %1323
    %1327 = vset.pattern.permute.xlu0 32
    %1328 = vperm.xlu0 %1327, %v896
    %v1329 = vpop.permute.xlu0 %1328
    %1332 = vset.pattern.permute.xlu0 32
    %1333 = vperm.xlu0 %1332, %v899
    %v1334 = vpop.permute.xlu0 %1333
    %1337 = vset.pattern.permute.xlu0 32
    %1338 = vperm.xlu0 %1337, %v902
    %v1339 = vpop.permute.xlu0 %1338
    %1342 = vset.pattern.permute.xlu0 32
    %1343 = vperm.xlu0 %1342, %v905
    %v1344 = vpop.permute.xlu0 %1343
    %1347 = vset.pattern.permute.xlu0 32
    %1348 = vperm.xlu0 %1347, %v908
    %v1349 = vpop.permute.xlu0 %1348
    %v1351 = vmul.f32 %v1314, %v1273
    %v1352 = vmul.f32 %v1319, %v1274
    %v1353 = vmul.f32 %v1324, %v1275
    %v1354 = vmul.f32 %v1329, %v1276
    %v1355 = vmul.f32 %v1334, %v1277
    %v1356 = vmul.f32 %v1339, %v1278
    %v1357 = vmul.f32 %v1344, %v1279
    %v1358 = vmul.f32 %v1349, %v1280
    %v1359 = vsel %vm1289, %v1351, 0.0
    %v1360 = vsel %vm1289, %v1352, 0.0
    %v1361 = vadd.f32 %v1359, %v1360
    %v1362 = vsel %vm1289, %v1353, 0.0
    %v1363 = vadd.f32 %v1361, %v1362
    %v1364 = vsel %vm1289, %v1354, 0.0
    %v1365 = vadd.f32 %v1363, %v1364
    %v1366 = vsel %vm1289, %v1355, 0.0
    %v1367 = vadd.f32 %v1365, %v1366
    %v1368 = vsel %vm1289, %v1356, 0.0
    %v1369 = vadd.f32 %v1367, %v1368
    %v1370 = vsel %vm1289, %v1357, 0.0
    %v1371 = vadd.f32 %v1369, %v1370
    %v1372 = vsel %vm1289, %v1358, 0.0
    %v1373 = vadd.f32 %v1371, %v1372
    %v1374 = vrot.slane %v1373, 4
    %v1375 = vadd.f32 %v1373, %v1374
    %v1376 = vrot.slane %v1375, 2
    %v1377 = vadd.f32 %v1375, %v1376
    %v1378 = vrot.slane %v1377, 1
    %v1379 = vadd.f32 %v1377, %v1378
    %v1380 = vmul.f32 %v1224, %v1273
    %v1381 = vmul.f32 %v1227, %v1274
    %v1382 = vmul.f32 %v1230, %v1275
    %v1383 = vmul.f32 %v1233, %v1276
    %v1384 = vmul.f32 %v1236, %v1277
    %v1385 = vmul.f32 %v1239, %v1278
    %v1386 = vmul.f32 %v1242, %v1279
    %v1387 = vmul.f32 %v1245, %v1280
    %v1388 = vsel %vm1289, %v1380, 0.0
    %v1389 = vsel %vm1289, %v1381, 0.0
    %v1390 = vadd.f32 %v1388, %v1389
    %v1391 = vsel %vm1289, %v1382, 0.0
    %v1392 = vadd.f32 %v1390, %v1391
    %v1393 = vsel %vm1289, %v1383, 0.0
    %v1394 = vadd.f32 %v1392, %v1393
    %v1395 = vsel %vm1289, %v1384, 0.0
    %v1396 = vadd.f32 %v1394, %v1395
    %v1397 = vsel %vm1289, %v1385, 0.0
    %v1398 = vadd.f32 %v1396, %v1397
    %v1399 = vsel %vm1289, %v1386, 0.0
    %v1400 = vadd.f32 %v1398, %v1399
    %v1401 = vsel %vm1289, %v1387, 0.0
    %v1402 = vadd.f32 %v1400, %v1401
    %v1403 = vrot.slane %v1402, 4
    %v1404 = vadd.f32 %v1402, %v1403
    %v1405 = vrot.slane %v1404, 2
    %v1406 = vadd.f32 %v1404, %v1405
    %v1407 = vrot.slane %v1406, 1
    %v1408 = vadd.f32 %v1406, %v1407
    %v1409 = vld [vmem:[%s1] sm:$0x1]
    %v1410 = vld [vmem:[%s2] sm:$0x1]
    %s1411 = sld [smem:[#allocation2]]
    %s1412 = sld [smem:[#allocation2 + $0x1]]
    %v1413 = vstv %s1411
    %v1414 = vmul.f32 %v1413, %v1409
    %v1415 = vadd.f32 %v1379, %v1414
    %v1416 = vstv %s1412
    %v1417 = vadd.f32 %v1415, %v1416
    %v1418 = vstv %s1411
    %v1419 = vrcp.pop %v1418
    %v1420 = vmul.f32 %v1418, %v1419
    %v1421 = vsub.f32 1.0, %v1420
    %v1422 = vmul.f32 %v1419, %v1421
    %v1423 = vadd.f32 %v1419, %v1422
    %vm1424 = vweird.f32 %v1418
    %vm1425 = vweird.f32 %v1419
    %vm1426 = vmor %vm1424, %vm1425
    %v1427 = vsel %vm1426, %v1419, %v1423
    %v1428 = vand.u32 2147483647, %v1418
    %vm1429 = vcmp.eq.f32.partialorder %v1428, 8.507059e+37
    %v1430 = vand.u32 %v1418, 2147483648
    %v1431 = vor.u32 1.1754944e-38, %v1430
    %v1432 = vsel %vm1429, %v1431, %v1427
    %s1433 = vtos %v1432
    %v1434 = vadd.f32 %v1379, %v1416
    %v1435 = vmul.f32 %v1434, 1.442695
    %v1436 = vpow.pop %v1435
    %v1437 = vmul.f32 %v1417, 1.442695
    %v1438 = vpow.pop %v1437
    %v1439 = vsub.f32 %v1436, %v1438
    %v1440 = vstv %s1433
    %v1441 = vmul.f32 %v1440, %v1439
    %v1442 = vadd.f32 %v1417, %v1441
    %vm1443 = vcmp.ge.s32.totalorder %v1256, 8
    %v1444 = vsel %vm1443, 1, 0
    %v1445 = vcvt.s32.f32 %v1444
    %v1446 = vmul.f32 %v1445, %v1410
    %v1447 = vsel %vm1443, %v1442, 0.0
    %vm1448 = vcmask 516096
    %1449 = vst.msk [vmem:[#allocation6] sm:$0x1] %vm1448, %v1447
    %1450 = vst.msk [vmem:[#allocation7] sm:$0x1] %vm1448, %v1310
    %v1451 = vsub.f32 0.0, %v1310
    %v1452 = vmul.f32 %v1451, %v1446
    %v1453 = vsel %vm1448, %v1452, 0.0
    %1454 = vadd.xlane.f32.xlu0 %v1453
    %v1455 = vpop.xlane.xlu0 %1454
    %v1456 = vrot.slane %v1455, 4
    %v1457 = vadd.f32 %v1455, %v1456
    %v1458 = vrot.slane %v1457, 2
    %v1459 = vadd.f32 %v1457, %v1458
    %v1460 = vrot.slane %v1459, 1
    %v1461 = vadd.f32 %v1459, %v1460
    %s1462 = vtos %v1461
    %v1463 = vsub.f32 0.0, %v1442
    %v1464 = vmul.f32 %v1463, %v1446
    %v1465 = vsel %vm1448, %v1464, 0.0
    %1466 = vadd.xlane.f32.xlu0 %v1465
    %v1467 = vpop.xlane.xlu0 %1466
    %v1468 = vrot.slane %v1467, 4
    %v1469 = vadd.f32 %v1467, %v1468
    %v1470 = vrot.slane %v1469, 2
    %v1471 = vadd.f32 %v1469, %v1470
    %v1472 = vrot.slane %v1471, 1
    %v1473 = vadd.f32 %v1471, %v1472
    %s1474 = vtos %v1473
    %s1475 = sadd.f32 %s1474, %s1462
    %s1476 = scalar_lea.smem [#allocation9], 0
    %1477 = sst [smem:[%s1476]] %s1475
    %s1478 = scalar_lea.smem [#allocation9], 1
    %1479 = sst [smem:[%s1478]] %s1462
    %s1480 = scalar_lea.smem [#allocation9], 2
    %1481 = sst [smem:[%s1480]] %s1474
    %v1482 = vmul.f32 %v1408, %v1446
    %v1483 = vsel %vm1448, %v1482, 0.0
    %1484 = vadd.xlane.f32.xlu0 %v1483
    %v1485 = vpop.xlane.xlu0 %1484
    %v1486 = vrot.slane %v1485, 4
    %v1487 = vadd.f32 %v1485, %v1486
    %v1488 = vrot.slane %v1487, 2
    %v1489 = vadd.f32 %v1487, %v1488
    %v1490 = vrot.slane %v1489, 1
    %v1491 = vadd.f32 %v1489, %v1490
    %s1492 = vtos %v1491
    %s1493 = scalar_lea.smem [#allocation9], 3
    %1494 = sst [smem:[%s1493]] %s1492
    // Predicated region
    $region62: #{tpu_custom_call.1} parent=1 // pred_check
      _
    $region63: #{tpu_custom_call.1} parent=1 // pred_check_branch
      %1496 = sbr.rel (0) target = $region65
    $region64: #{tpu_custom_call.1} parent=1 // pred_region
      %1498 = vsyncadd [#allocation3], 0
      %s1500 = sshll.u32 [#allocation6], 4
      %s1501 = int_to_ptr.vmem [resolvable:$true] %s1500
      %s1502 = sshll.u32 %s14, 4
      %s1503 = int_to_ptr.hbm [resolvable:$true] %s1502
      %1505 = dma.vmem_to_hbm [thread:$0]  %s1501, 16, %s1503, [#allocation3]
    $region65: #{tpu_custom_call.1} parent=1 // pred_fallthru
      _
    // Predicated region
    $region66: #{tpu_custom_call.1} parent=1 // pred_check
      _
    $region67: #{tpu_custom_call.1} parent=1 // pred_check_branch
      %1507 = sbr.rel (0) target = $region69
    $region68: #{tpu_custom_call.1} parent=1 // pred_region
      %1509 = vsyncadd [#allocation8], 0
      %s1511 = sshll.u32 [#allocation7], 4
      %s1512 = int_to_ptr.vmem [resolvable:$true] %s1511
      %s1513 = sshll.u32 %s15, 4
      %s1514 = int_to_ptr.hbm [resolvable:$true] %s1513
      %1516 = dma.vmem_to_hbm [thread:$0]  %s1512, 16, %s1514, [#allocation8]
    $region69: #{tpu_custom_call.1} parent=1 // pred_fallthru
      _
    // Predicated region
    $region70: #{tpu_custom_call.1} parent=1 // pred_check
      _
    $region71: #{tpu_custom_call.1} parent=1 // pred_check_branch
      %1518 = sbr.rel (0) target = $region73
    $region72: #{tpu_custom_call.1} parent=1 // pred_region
      %1520 = vsyncadd [#allocation4], 0
      %s1522 = sshll.u32 %s16, 4
      %s1523 = int_to_ptr.hbm [resolvable:$true] %s1522
      %1525 = dma.smem_to_hbm [#allocation9], 16, %s1523, [#allocation4]
    $region73: #{tpu_custom_call.1} parent=1 // pred_fallthru
      _
    // Predicated region
    $region74: #{tpu_custom_call.1} parent=1 // pred_check
      _
    $region75: #{tpu_custom_call.1} parent=1 // pred_check_branch
      %1527 = sbr.rel (0) target = $region77
    $region76: #{tpu_custom_call.1} parent=1 // pred_region
      %1529 = dma.done [#allocation3], 16
    $region77: #{tpu_custom_call.1} parent=1 // pred_fallthru
      _
    // Predicated region
    $region78: #{tpu_custom_call.1} parent=1 // pred_check
      _
    $region79: #{tpu_custom_call.1} parent=1 // pred_check_branch
      %1531 = sbr.rel (0) target = $region81
    $region80: #{tpu_custom_call.1} parent=1 // pred_region
      %1533 = dma.done [#allocation8], 16
    $region81: #{tpu_custom_call.1} parent=1 // pred_fallthru
      _
    // Predicated region
    $region82: #{tpu_custom_call.1} parent=1 // pred_check
      _
    $region83: #{tpu_custom_call.1} parent=1 // pred_check_branch
      %1535 = sbr.rel (0) target = $region85
    $region84: #{tpu_custom_call.1} parent=1 // pred_region
      %1537 = dma.done [#allocation4], 16
    $region85: #{tpu_custom_call.1} parent=1 // pred_fallthru
      _
    %1538 = sfence
    %1539 = vsyncpa [#allocation3], 1
    %1540 = vsyncpa [#allocation8], 1
    %1541 = vsyncpa [#allocation4], 1
    %1542 = vsyncpa [#allocation5], 1

</llo_original>
